<compile_context>
chip_gen: v7x
topology: tpu7x:2x2x1
jax: 0.10.0
libtpu: 0.0.40
codegen_flags: <defaults>
</compile_context>

<pallas_src>
import functools

import jax
import jax.numpy as jnp
from jax.experimental import pallas as pl
from jax.experimental.pallas import tpu as pltpu

LRELU_SLOPE = 0.2
BN_EPS = 0.8  # nn.BatchNorm1d(out_feat, 0.8) -> eps = 0.8


def _round_up(x, m):
    return (x + m - 1) // m * m


# ---------------------------------------------------------------------------
# Fused Pallas kernel: the entire 5-layer MLP in one invocation.
# ---------------------------------------------------------------------------
def _generator_fused_kernel(x_ref,
                            w1_ref, b1_ref, w2_ref, b2_ref, w3_ref, b3_ref,
                            w4_ref, b4_ref, w5_ref, b5_ref,
                            o_ref, *, b_valid):
    x = x_ref[...]                                   # (B_pad, K1_pad) f32

    # Row mask: only the first `b_valid` rows are real batch rows.
    row_ids = jax.lax.broadcasted_iota(jnp.int32, (x.shape[0], 1), 0)
    row_mask = row_ids < b_valid                     # (B_pad, 1)
    inv_b = 1.0 / float(b_valid)

    def linear(h, w_ref, b_ref):
        # bf16 MXU inputs, f32 accumulate, f32 bias add.
        return (jnp.dot(h.astype(jnp.bfloat16), w_ref[...],
                        preferred_element_type=jnp.float32)
                + b_ref[...])

    def lrelu(y):
        return jnp.where(y >= 0.0, y, LRELU_SLOPE * y)

    def batchnorm(y):
        # Training-mode BatchNorm1d over the *valid* batch rows only,
        # one-pass statistics (sum & sum-of-squares), biased variance,
        # gamma = 1, beta = 0.
        ym = jnp.where(row_mask, y, 0.0)
        s = jnp.sum(ym, axis=0, keepdims=True)
        ss = jnp.sum(ym * ym, axis=0, keepdims=True)
        mean = s * inv_b
        var = ss * inv_b - mean * mean
        return (y - mean) * jax.lax.rsqrt(var + BN_EPS)

    h = lrelu(linear(x, w1_ref, b1_ref))                       # block 1 (no BN)
    h = lrelu(batchnorm(linear(h, w2_ref, b2_ref)))            # block 2
    h = lrelu(batchnorm(linear(h, w3_ref, b3_ref)))            # block 3
    h = lrelu(batchnorm(linear(h, w4_ref, b4_ref)))            # block 4
    o_ref[...] = jnp.tanh(linear(h, w5_ref, b5_ref))           # head + tanh


# ---------------------------------------------------------------------------
# Parameter setup glue (plain JAX)
# ---------------------------------------------------------------------------
def spectral_normalize(w, key, n_iter=1):
    """SpectralNorm forward: W / sigma, 1 power iteration, deterministic u.

    w is stored PyTorch-style as (out_features, in_features).
    """
    out_f, _ = w.shape
    u = jax.random.normal(key, (out_f,), jnp.float32)
    u = u / (jnp.linalg.norm(u) + 1e-12)
    v = None
    for _ in range(n_iter):
        v = w.T @ u
        v = v / (jnp.linalg.norm(v) + 1e-12)
        u = w @ v
        u = u / (jnp.linalg.norm(u) + 1e-12)
    sigma = u @ (w @ v)
    return w / sigma


def init_params(key, z_dim, mlp_dim, image_size, rgb_channel):
    """Returns (raw_params, kernel_params).

    raw_params:    [(W (out,in) f32, b (out,) f32), ...]   -- for the reference
    kernel_params: [(W (K_pad, N_pad) bf16, b (1, N_pad) f32), ...]
                   K/N padded to multiples of 128 (final N left at H*W*C).
    """
    dims = [z_dim, 128, mlp_dim * 4, mlp_dim * 12, mlp_dim * 48,
            image_size * image_size * rgb_channel]
    n_layers = len(dims) - 1
    keys = jax.random.split(key, 3 * n_layers)

    raw_params = []
    kernel_params = []
    for li in range(n_layers):
        in_f, out_f = dims[li], dims[li + 1]
        k_w, k_b, k_u = keys[3 * li], keys[3 * li + 1], keys[3 * li + 2]
        bound = 1.0 / jnp.sqrt(in_f)
        w = jax.random.uniform(k_w, (out_f, in_f), jnp.float32, -bound, bound)
        b = jax.random.uniform(k_b, (out_f,), jnp.float32, -bound, bound)
        if li < n_layers - 1:  # blocks 1-4 wrap the Linear in SpectralNorm
            w = spectral_normalize(w, k_u, n_iter=1)
        raw_params.append((w, b))

        # Kernel layout: (K, N), zero-padded to lane-dense widths, bf16 weights.
        k_pad = _round_up(in_f, 128)
        n_pad = _round_up(out_f, 128) if li < n_layers - 1 else out_f
        w_kn = jnp.zeros((k_pad, n_pad), jnp.float32).at[:in_f, :out_f].set(w.T)
        b_n = jnp.zeros((1, n_pad), jnp.float32).at[0, :out_f].set(b)
        kernel_params.append((w_kn.astype(jnp.bfloat16), b_n))
    return raw_params, kernel_params


# ---------------------------------------------------------------------------
# Full forward (single fused pallas_call)
# ---------------------------------------------------------------------------
@functools.partial(jax.jit, static_argnums=(2, 3))
def generator_mlp_forward(z, kernel_params, image_size, rgb_channel):
    B, z_dim = z.shape
    b_pad = _round_up(B, 8)                    # full sublane occupancy
    k_pad = kernel_params[0][0].shape[0]       # padded z_dim
    n_out = kernel_params[-1][0].shape[1]      # image_size*image_size*rgb

    x = jnp.zeros((b_pad, k_pad), jnp.float32).at[:B, :z_dim].set(z)

    flat_args = [x]
    for w, b in kernel_params:
        flat_args.append(w)
        flat_args.append(b)

    out = pl.pallas_call(
        functools.partial(_generator_fused_kernel, b_valid=B),
        out_shape=jax.ShapeDtypeStruct((b_pad, n_out), jnp.float32),
        in_specs=[pl.BlockSpec(memory_space=pltpu.MemorySpace.VMEM)
                  for _ in flat_args],
        out_specs=pl.BlockSpec(memory_space=pltpu.MemorySpace.VMEM),
    )(*flat_args)

    x_img = out[:B].reshape(B, rgb_channel, image_size, image_size)  # NCHW view
    return (x_img, None, None)


# ---------------------------------------------------------------------------
# Pure-JAX reference (same bf16-in / f32-acc numerics, unpadded shapes)
# ---------------------------------------------------------------------------
def reference_forward(z, raw_params, image_size, rgb_channel):
    modes = ["lrelu", "bn_lrelu", "bn_lrelu", "bn_lrelu", "tanh"]
    x = z
    for (w, b), mode in zip(raw_params, modes):
        y = jnp.dot(x.astype(jnp.bfloat16), w.T.astype(jnp.bfloat16),
                    preferred_element_type=jnp.float32) + b[None, :]
        if mode == "bn_lrelu":
            mean = jnp.mean(y, axis=0, keepdims=True)
            var = jnp.mean((y - mean) ** 2, axis=0, keepdims=True)
            y = (y - mean) * jax.lax.rsqrt(var + BN_EPS)
            y = jnp.where(y >= 0.0, y, LRELU_SLOPE * y)
        elif mode == "lrelu":
            y = jnp.where(y >= 0.0, y, LRELU_SLOPE * y)
        else:
            y = jnp.tanh(y)
        x = y
    return x.reshape(z.shape[0], rgb_channel, image_size, image_size)


# ---------------------------------------------------------------------------
if __name__ == "__main__":
    # Small shapes consistent with the module's constructor knobs.
    BATCH = 4
    Z_DIM = 32
    MLP_DIM = 8
    IMAGE_SIZE = 16
    RGB = 3

    key = jax.random.PRNGKey(0)
    k_params, k_z = jax.random.split(key)
    raw_params, kernel_params = init_params(k_params, Z_DIM, MLP_DIM,
                                            IMAGE_SIZE, RGB)
    z = jax.random.normal(k_z, (BATCH, Z_DIM), jnp.float32)

    out, aux1, aux2 = generator_mlp_forward(z, kernel_params, IMAGE_SIZE, RGB)
    out = jax.block_until_ready(out)

    assert out.shape == (BATCH, RGB, IMAGE_SIZE, IMAGE_SIZE), out.shape
    assert out.dtype == jnp.float32
    assert bool(jnp.all(jnp.isfinite(out)))
    assert bool(jnp.all(jnp.abs(out) <= 1.0 + 1e-6))  # tanh range
    assert aux1 is None and aux2 is None

    ref = reference_forward(z, raw_params, IMAGE_SIZE, RGB)
    assert bool(jnp.allclose(out, ref, atol=1e-2)), \
        float(jnp.max(jnp.abs(out - ref)))

    print("KERNEL_OK")
</pallas_src>

<mosaic_0001>
module attributes {stable_mosaic.version = 11 : i64} {
  func.func @_generator_fused_kernel(%arg0: memref<8x128xf32, #tpu.memory_space<vmem>>, %arg1: memref<128x128xbf16, #tpu.memory_space<vmem>>, %arg2: memref<1x128xf32, #tpu.memory_space<vmem>>, %arg3: memref<128x128xbf16, #tpu.memory_space<vmem>>, %arg4: memref<1x128xf32, #tpu.memory_space<vmem>>, %arg5: memref<128x128xbf16, #tpu.memory_space<vmem>>, %arg6: memref<1x128xf32, #tpu.memory_space<vmem>>, %arg7: memref<128x384xbf16, #tpu.memory_space<vmem>>, %arg8: memref<1x384xf32, #tpu.memory_space<vmem>>, %arg9: memref<384x768xbf16, #tpu.memory_space<vmem>>, %arg10: memref<1x768xf32, #tpu.memory_space<vmem>>, %arg11: memref<8x768xf32, #tpu.memory_space<vmem>>) attributes {dimension_semantics = [], scalar_prefetch = 0 : i64, scratch_operands = 0 : i64, tpu.core_type = #tpu.core_type<tc>} {
    %c0 = arith.constant 0 : index
    %c0_0 = arith.constant 0 : index
    %0 = vector.load %arg0[%c0, %c0_0] : memref<8x128xf32, #tpu.memory_space<vmem>>, vector<8x128xf32>
    %1 = tpu.iota {dimensions = array<i32: 0>} : vector<8x1xi32>
    %c4_i32 = arith.constant 4 : i32
    %2 = vector.broadcast %c4_i32 : i32 to vector<8x1xi32>
    %3 = arith.cmpi slt, %1, %2 : vector<8x1xi32>
    %4 = arith.truncf %0 : vector<8x128xf32> to vector<8x128xbf16>
    %c0_1 = arith.constant 0 : index
    %c0_2 = arith.constant 0 : index
    %5 = vector.load %arg1[%c0_1, %c0_2] : memref<128x128xbf16, #tpu.memory_space<vmem>>, vector<128x128xbf16>
    %cst = arith.constant dense<0.000000e+00> : vector<8x128xf32>
    %6 = tpu.matmul %4, %5, %cst {dimension_numbers = #tpu.dot_dimension_numbers<[1], [0], [0], [1], [0, 0, 1, 1], [], []>} : vector<8x128xbf16>, vector<128x128xbf16>, vector<8x128xf32> -> vector<8x128xf32>
    %c0_3 = arith.constant 0 : index
    %c0_4 = arith.constant 0 : index
    %7 = vector.load %arg2[%c0_3, %c0_4] : memref<1x128xf32, #tpu.memory_space<vmem>>, vector<1x128xf32>
    %8 = vector.broadcast %7 : vector<1x128xf32> to vector<8x128xf32>
    %9 = arith.addf %6, %8 : vector<8x128xf32>
    %cst_5 = arith.constant 0.000000e+00 : f32
    %10 = vector.broadcast %cst_5 : f32 to vector<8x128xf32>
    %11 = arith.cmpf oge, %9, %10 : vector<8x128xf32>
    %cst_6 = arith.constant 2.000000e-01 : f32
    %12 = vector.broadcast %cst_6 : f32 to vector<8x128xf32>
    %13 = arith.mulf %12, %9 : vector<8x128xf32>
    %14 = arith.select %11, %9, %13 : vector<8x128xi1>, vector<8x128xf32>
    %15 = arith.truncf %14 : vector<8x128xf32> to vector<8x128xbf16>
    %c0_7 = arith.constant 0 : index
    %c0_8 = arith.constant 0 : index
    %16 = vector.load %arg3[%c0_7, %c0_8] : memref<128x128xbf16, #tpu.memory_space<vmem>>, vector<128x128xbf16>
    %cst_9 = arith.constant dense<0.000000e+00> : vector<8x128xf32>
    %17 = tpu.matmul %15, %16, %cst_9 {dimension_numbers = #tpu.dot_dimension_numbers<[1], [0], [0], [1], [0, 0, 1, 1], [], []>} : vector<8x128xbf16>, vector<128x128xbf16>, vector<8x128xf32> -> vector<8x128xf32>
    %c0_10 = arith.constant 0 : index
    %c0_11 = arith.constant 0 : index
    %18 = vector.load %arg4[%c0_10, %c0_11] : memref<1x128xf32, #tpu.memory_space<vmem>>, vector<1x128xf32>
    %19 = vector.broadcast %18 : vector<1x128xf32> to vector<8x128xf32>
    %20 = arith.addf %17, %19 : vector<8x128xf32>
    %cst_12 = arith.constant 0.000000e+00 : f32
    %21 = vector.shape_cast %3 : vector<8x1xi1> to vector<8x1xi1>
    %22 = vector.broadcast %21 : vector<8x1xi1> to vector<8x128xi1>
    %23 = vector.broadcast %cst_12 : f32 to vector<8x128xf32>
    %24 = arith.select %22, %20, %23 : vector<8x128xi1>, vector<8x128xf32>
    %cst_13 = arith.constant dense<0.000000e+00> : vector<128xf32>
    %25 = vector.multi_reduction <add>, %24, %cst_13 [0] : vector<8x128xf32> to vector<128xf32>
    %26 = vector.shape_cast %25 : vector<128xf32> to vector<1x128xf32>
    %27 = arith.mulf %24, %24 : vector<8x128xf32>
    %cst_14 = arith.constant dense<0.000000e+00> : vector<128xf32>
    %28 = vector.multi_reduction <add>, %27, %cst_14 [0] : vector<8x128xf32> to vector<128xf32>
    %29 = vector.shape_cast %28 : vector<128xf32> to vector<1x128xf32>
    %cst_15 = arith.constant 2.500000e-01 : f32
    %30 = vector.broadcast %cst_15 : f32 to vector<1x128xf32>
    %31 = arith.mulf %26, %30 : vector<1x128xf32>
    %cst_16 = arith.constant 2.500000e-01 : f32
    %32 = vector.broadcast %cst_16 : f32 to vector<1x128xf32>
    %33 = arith.mulf %29, %32 : vector<1x128xf32>
    %34 = arith.mulf %31, %31 : vector<1x128xf32>
    %35 = arith.subf %33, %34 : vector<1x128xf32>
    %36 = vector.broadcast %31 : vector<1x128xf32> to vector<8x128xf32>
    %37 = arith.subf %20, %36 : vector<8x128xf32>
    %cst_17 = arith.constant 8.000000e-01 : f32
    %38 = vector.broadcast %cst_17 : f32 to vector<1x128xf32>
    %39 = arith.addf %35, %38 : vector<1x128xf32>
    %40 = math.rsqrt %39 : vector<1x128xf32>
    %41 = vector.broadcast %40 : vector<1x128xf32> to vector<8x128xf32>
    %42 = arith.mulf %37, %41 : vector<8x128xf32>
    %cst_18 = arith.constant 0.000000e+00 : f32
    %43 = vector.broadcast %cst_18 : f32 to vector<8x128xf32>
    %44 = arith.cmpf oge, %42, %43 : vector<8x128xf32>
    %cst_19 = arith.constant 2.000000e-01 : f32
    %45 = vector.broadcast %cst_19 : f32 to vector<8x128xf32>
    %46 = arith.mulf %45, %42 : vector<8x128xf32>
    %47 = arith.select %44, %42, %46 : vector<8x128xi1>, vector<8x128xf32>
    %48 = arith.truncf %47 : vector<8x128xf32> to vector<8x128xbf16>
    %c0_20 = arith.constant 0 : index
    %c0_21 = arith.constant 0 : index
    %49 = vector.load %arg5[%c0_20, %c0_21] : memref<128x128xbf16, #tpu.memory_space<vmem>>, vector<128x128xbf16>
    %cst_22 = arith.constant dense<0.000000e+00> : vector<8x128xf32>
    %50 = tpu.matmul %48, %49, %cst_22 {dimension_numbers = #tpu.dot_dimension_numbers<[1], [0], [0], [1], [0, 0, 1, 1], [], []>} : vector<8x128xbf16>, vector<128x128xbf16>, vector<8x128xf32> -> vector<8x128xf32>
    %c0_23 = arith.constant 0 : index
    %c0_24 = arith.constant 0 : index
    %51 = vector.load %arg6[%c0_23, %c0_24] : memref<1x128xf32, #tpu.memory_space<vmem>>, vector<1x128xf32>
    %52 = vector.broadcast %51 : vector<1x128xf32> to vector<8x128xf32>
    %53 = arith.addf %50, %52 : vector<8x128xf32>
    %cst_25 = arith.constant 0.000000e+00 : f32
    %54 = vector.shape_cast %3 : vector<8x1xi1> to vector<8x1xi1>
    %55 = vector.broadcast %54 : vector<8x1xi1> to vector<8x128xi1>
    %56 = vector.broadcast %cst_25 : f32 to vector<8x128xf32>
    %57 = arith.select %55, %53, %56 : vector<8x128xi1>, vector<8x128xf32>
    %cst_26 = arith.constant dense<0.000000e+00> : vector<128xf32>
    %58 = vector.multi_reduction <add>, %57, %cst_26 [0] : vector<8x128xf32> to vector<128xf32>
    %59 = vector.shape_cast %58 : vector<128xf32> to vector<1x128xf32>
    %60 = arith.mulf %57, %57 : vector<8x128xf32>
    %cst_27 = arith.constant dense<0.000000e+00> : vector<128xf32>
    %61 = vector.multi_reduction <add>, %60, %cst_27 [0] : vector<8x128xf32> to vector<128xf32>
    %62 = vector.shape_cast %61 : vector<128xf32> to vector<1x128xf32>
    %cst_28 = arith.constant 2.500000e-01 : f32
    %63 = vector.broadcast %cst_28 : f32 to vector<1x128xf32>
    %64 = arith.mulf %59, %63 : vector<1x128xf32>
    %cst_29 = arith.constant 2.500000e-01 : f32
    %65 = vector.broadcast %cst_29 : f32 to vector<1x128xf32>
    %66 = arith.mulf %62, %65 : vector<1x128xf32>
    %67 = arith.mulf %64, %64 : vector<1x128xf32>
    %68 = arith.subf %66, %67 : vector<1x128xf32>
    %69 = vector.broadcast %64 : vector<1x128xf32> to vector<8x128xf32>
    %70 = arith.subf %53, %69 : vector<8x128xf32>
    %cst_30 = arith.constant 8.000000e-01 : f32
    %71 = vector.broadcast %cst_30 : f32 to vector<1x128xf32>
    %72 = arith.addf %68, %71 : vector<1x128xf32>
    %73 = math.rsqrt %72 : vector<1x128xf32>
    %74 = vector.broadcast %73 : vector<1x128xf32> to vector<8x128xf32>
    %75 = arith.mulf %70, %74 : vector<8x128xf32>
    %cst_31 = arith.constant 0.000000e+00 : f32
    %76 = vector.broadcast %cst_31 : f32 to vector<8x128xf32>
    %77 = arith.cmpf oge, %75, %76 : vector<8x128xf32>
    %cst_32 = arith.constant 2.000000e-01 : f32
    %78 = vector.broadcast %cst_32 : f32 to vector<8x128xf32>
    %79 = arith.mulf %78, %75 : vector<8x128xf32>
    %80 = arith.select %77, %75, %79 : vector<8x128xi1>, vector<8x128xf32>
    %81 = arith.truncf %80 : vector<8x128xf32> to vector<8x128xbf16>
    %c0_33 = arith.constant 0 : index
    %c0_34 = arith.constant 0 : index
    %82 = vector.load %arg7[%c0_33, %c0_34] : memref<128x384xbf16, #tpu.memory_space<vmem>>, vector<128x384xbf16>
    %cst_35 = arith.constant dense<0.000000e+00> : vector<8x384xf32>
    %83 = tpu.matmul %81, %82, %cst_35 {dimension_numbers = #tpu.dot_dimension_numbers<[1], [0], [0], [1], [0, 0, 1, 1], [], []>} : vector<8x128xbf16>, vector<128x384xbf16>, vector<8x384xf32> -> vector<8x384xf32>
    %c0_36 = arith.constant 0 : index
    %c0_37 = arith.constant 0 : index
    %84 = vector.load %arg8[%c0_36, %c0_37] : memref<1x384xf32, #tpu.memory_space<vmem>>, vector<1x384xf32>
    %85 = vector.broadcast %84 : vector<1x384xf32> to vector<8x384xf32>
    %86 = arith.addf %83, %85 : vector<8x384xf32>
    %cst_38 = arith.constant 0.000000e+00 : f32
    %87 = vector.shape_cast %3 : vector<8x1xi1> to vector<8x1xi1>
    %88 = vector.broadcast %87 : vector<8x1xi1> to vector<8x384xi1>
    %89 = vector.broadcast %cst_38 : f32 to vector<8x384xf32>
    %90 = arith.select %88, %86, %89 : vector<8x384xi1>, vector<8x384xf32>
    %cst_39 = arith.constant dense<0.000000e+00> : vector<384xf32>
    %91 = vector.multi_reduction <add>, %90, %cst_39 [0] : vector<8x384xf32> to vector<384xf32>
    %92 = vector.shape_cast %91 : vector<384xf32> to vector<1x384xf32>
    %93 = arith.mulf %90, %90 : vector<8x384xf32>
    %cst_40 = arith.constant dense<0.000000e+00> : vector<384xf32>
    %94 = vector.multi_reduction <add>, %93, %cst_40 [0] : vector<8x384xf32> to vector<384xf32>
    %95 = vector.shape_cast %94 : vector<384xf32> to vector<1x384xf32>
    %cst_41 = arith.constant 2.500000e-01 : f32
    %96 = vector.broadcast %cst_41 : f32 to vector<1x384xf32>
    %97 = arith.mulf %92, %96 : vector<1x384xf32>
    %cst_42 = arith.constant 2.500000e-01 : f32
    %98 = vector.broadcast %cst_42 : f32 to vector<1x384xf32>
    %99 = arith.mulf %95, %98 : vector<1x384xf32>
    %100 = arith.mulf %97, %97 : vector<1x384xf32>
    %101 = arith.subf %99, %100 : vector<1x384xf32>
    %102 = vector.broadcast %97 : vector<1x384xf32> to vector<8x384xf32>
    %103 = arith.subf %86, %102 : vector<8x384xf32>
    %cst_43 = arith.constant 8.000000e-01 : f32
    %104 = vector.broadcast %cst_43 : f32 to vector<1x384xf32>
    %105 = arith.addf %101, %104 : vector<1x384xf32>
    %106 = math.rsqrt %105 : vector<1x384xf32>
    %107 = vector.broadcast %106 : vector<1x384xf32> to vector<8x384xf32>
    %108 = arith.mulf %103, %107 : vector<8x384xf32>
    %cst_44 = arith.constant 0.000000e+00 : f32
    %109 = vector.broadcast %cst_44 : f32 to vector<8x384xf32>
    %110 = arith.cmpf oge, %108, %109 : vector<8x384xf32>
    %cst_45 = arith.constant 2.000000e-01 : f32
    %111 = vector.broadcast %cst_45 : f32 to vector<8x384xf32>
    %112 = arith.mulf %111, %108 : vector<8x384xf32>
    %113 = arith.select %110, %108, %112 : vector<8x384xi1>, vector<8x384xf32>
    %114 = arith.truncf %113 : vector<8x384xf32> to vector<8x384xbf16>
    %c0_46 = arith.constant 0 : index
    %c0_47 = arith.constant 0 : index
    %115 = vector.load %arg9[%c0_46, %c0_47] : memref<384x768xbf16, #tpu.memory_space<vmem>>, vector<384x768xbf16>
    %cst_48 = arith.constant dense<0.000000e+00> : vector<8x768xf32>
    %116 = tpu.matmul %114, %115, %cst_48 {dimension_numbers = #tpu.dot_dimension_numbers<[1], [0], [0], [1], [0, 0, 1, 1], [], []>} : vector<8x384xbf16>, vector<384x768xbf16>, vector<8x768xf32> -> vector<8x768xf32>
    %c0_49 = arith.constant 0 : index
    %c0_50 = arith.constant 0 : index
    %117 = vector.load %arg10[%c0_49, %c0_50] : memref<1x768xf32, #tpu.memory_space<vmem>>, vector<1x768xf32>
    %118 = vector.broadcast %117 : vector<1x768xf32> to vector<8x768xf32>
    %119 = arith.addf %116, %118 : vector<8x768xf32>
    %120 = math.tanh %119 : vector<8x768xf32>
    %c0_51 = arith.constant 0 : index
    %c0_52 = arith.constant 0 : index
    %121 = vector.load %arg11[%c0_51, %c0_52] : memref<8x768xf32, #tpu.memory_space<vmem>>, vector<8x768xf32>
    tpu.vector_store %arg11[%c0_51, %c0_52], %120 {strides = array<i32>} : memref<8x768xf32, #tpu.memory_space<vmem>>, vector<8x768xf32>,
    return
  }
}

</mosaic_0001>

<llo_original>
// kernel: generator_mlp_forward.1
$region0: #{generator_mlp_forward.1}
  #allocation0 [shape = 'u32[]', space=smem, size = 0x4, offset = 0x4, fixed_abs, tag = 'smem constant byte address 0x4 - core index']
  #allocation1 [shape = 'u32[144,128]{1,0:T(1,128)}', space=vmem, size = 0x12000, scoped, tag = 'internal scratch']
  %s0 = inlined_call_operand.vmem [shape: f32[8,128], index: 0, kind: input, shape index: {}]
  %s1 = inlined_call_operand.hbm [shape: bf16[128,128], index: 1, kind: input, shape index: {}]
  %s2 = inlined_call_operand.vmem [shape: f32[1,128], index: 2, kind: input, shape index: {}]
  %s3 = inlined_call_operand.hbm [shape: bf16[128,128], index: 3, kind: input, shape index: {}]
  %s4 = inlined_call_operand.vmem [shape: f32[1,128], index: 4, kind: input, shape index: {}]
  %s5 = inlined_call_operand.hbm [shape: bf16[128,128], index: 5, kind: input, shape index: {}]
  %s6 = inlined_call_operand.vmem [shape: f32[1,128], index: 6, kind: input, shape index: {}]
  %s7 = inlined_call_operand.hbm [shape: bf16[128,384], index: 7, kind: input, shape index: {}]
  %s8 = inlined_call_operand.vmem [shape: f32[1,384], index: 8, kind: input, shape index: {}]
  %s9 = inlined_call_operand.hbm [shape: bf16[384,768], index: 9, kind: input, shape index: {}]
  %s10 = inlined_call_operand.vmem [shape: f32[1,768], index: 10, kind: input, shape index: {}]
  %s11 = inlined_call_operand.vmem [shape: f32[8,768], index: 11, kind: output, shape index: {}]
  %s12 = sld [smem:[#allocation0]]
  $region74: #{generator_mlp_forward.1} parent=0
    _
  %s14 = ssub.s32 1, %s12
  %s15 = scalar_select 0, %s14, %s12
  $region1: #{generator_mlp_forward.1} parent=0
    #allocation2 [shape = 'u8[32768]{0}', space=vmem, size = 0x8000, scoped, tag = 'input window, operand 1, single buffered']
    #allocation3 [shape = 's32[1]{0}', space=sflag, size = 0x4, scoped, tag = 'scoped memory for generator_mlp_forward.1']
    #allocation4 [shape = 'u8[32768]{0}', space=vmem, size = 0x8000, scoped, tag = 'input window, operand 3, single buffered']
    #allocation5 [shape = 's32[1]{0}', space=sflag, size = 0x4, scoped, tag = 'scoped memory for generator_mlp_forward.1']
    #allocation6 [shape = 'u8[32768]{0}', space=vmem, size = 0x8000, scoped, tag = 'input window, operand 5, single buffered']
    #allocation7 [shape = 'u8[98304]{0}', space=vmem, size = 0x18000, scoped, tag = 'input window, operand 7, single buffered']
    #allocation8 [shape = 's32[1]{0}', space=sflag, size = 0x4, scoped, tag = 'scoped memory for generator_mlp_forward.1']
    #allocation9 [shape = 'u8[589824]{0}', space=vmem, size = 0x90000, scoped, tag = 'input window, operand 9, single buffered']
    %16 = vsyncpa [#allocation3], 0
    %17 = vsyncpa [#allocation5], 0
    %18 = vsyncpa [#allocation8], 0
    // Predicated region
    $region2: #{generator_mlp_forward.1} parent=1 // pred_check
      _
    $region3: #{generator_mlp_forward.1} parent=1 // pred_check_branch
      %20 = sbr.rel (0) target = $region5
    $region4: #{generator_mlp_forward.1} parent=1 // pred_region
      _
    $region5: #{generator_mlp_forward.1} parent=1 // pred_fallthru
      _
    // Predicated region
    $region6: #{generator_mlp_forward.1} parent=1 // pred_check
      _
    $region7: #{generator_mlp_forward.1} parent=1 // pred_check_branch
      %22 = sbr.rel (0) target = $region9
    $region8: #{generator_mlp_forward.1} parent=1 // pred_region
      %s24 = ssub.s32 1024, 1024
      %25 = vsyncadd [#allocation3], %s24
      %s26 = sshll.u32 [#allocation2], 4
      %s27 = int_to_ptr.vmem [resolvable:$true] %s26
      %32 = dma.hbm_to_vmem [thread:$0]  %s1, 1024, %s27, [#allocation3], 64, 64, 4
    $region9: #{generator_mlp_forward.1} parent=1 // pred_fallthru
      _
    // Predicated region
    $region10: #{generator_mlp_forward.1} parent=1 // pred_check
      _
    $region11: #{generator_mlp_forward.1} parent=1 // pred_check_branch
      %34 = sbr.rel (0) target = $region13
    $region12: #{generator_mlp_forward.1} parent=1 // pred_region
      _
    $region13: #{generator_mlp_forward.1} parent=1 // pred_fallthru
      _
    // Predicated region
    $region14: #{generator_mlp_forward.1} parent=1 // pred_check
      _
    $region15: #{generator_mlp_forward.1} parent=1 // pred_check_branch
      %36 = sbr.rel (0) target = $region17
    $region16: #{generator_mlp_forward.1} parent=1 // pred_region
      %s38 = ssub.s32 1024, 1024
      %39 = vsyncadd [#allocation5], %s38
      %s40 = sshll.u32 [#allocation4], 4
      %s41 = int_to_ptr.vmem [resolvable:$true] %s40
      %46 = dma.hbm_to_vmem [thread:$0]  %s3, 1024, %s41, [#allocation5], 64, 64, 4
    $region17: #{generator_mlp_forward.1} parent=1 // pred_fallthru
      _
    // Predicated region
    $region18: #{generator_mlp_forward.1} parent=1 // pred_check
      _
    $region19: #{generator_mlp_forward.1} parent=1 // pred_check_branch
      %48 = sbr.rel (0) target = $region21
    $region20: #{generator_mlp_forward.1} parent=1 // pred_region
      _
    $region21: #{generator_mlp_forward.1} parent=1 // pred_fallthru
      _
    // Predicated region
    $region22: #{generator_mlp_forward.1} parent=1 // pred_check
      _
    $region23: #{generator_mlp_forward.1} parent=1 // pred_check_branch
      %50 = sbr.rel (0) target = $region25
    $region24: #{generator_mlp_forward.1} parent=1 // pred_region
      %s52 = ssub.s32 1024, 1024
      %53 = vsyncadd [#allocation5], %s52
      %s54 = sshll.u32 [#allocation6], 4
      %s55 = int_to_ptr.vmem [resolvable:$true] %s54
      %60 = dma.hbm_to_vmem [thread:$0]  %s5, 1024, %s55, [#allocation5], 64, 64, 4
    $region25: #{generator_mlp_forward.1} parent=1 // pred_fallthru
      _
    // Predicated region
    $region26: #{generator_mlp_forward.1} parent=1 // pred_check
      _
    $region27: #{generator_mlp_forward.1} parent=1 // pred_check_branch
      %62 = sbr.rel (0) target = $region29
    $region28: #{generator_mlp_forward.1} parent=1 // pred_region
      _
    $region29: #{generator_mlp_forward.1} parent=1 // pred_fallthru
      _
    // Predicated region
    $region30: #{generator_mlp_forward.1} parent=1 // pred_check
      _
    $region31: #{generator_mlp_forward.1} parent=1 // pred_check_branch
      %64 = sbr.rel (0) target = $region33
    $region32: #{generator_mlp_forward.1} parent=1 // pred_region
      %s66 = ssub.s32 3072, 3072
      %67 = vsyncadd [#allocation8], %s66
      %s68 = sshll.u32 [#allocation7], 4
      %s69 = int_to_ptr.vmem [resolvable:$true] %s68
      %74 = dma.hbm_to_vmem [thread:$0]  %s7, 3072, %s69, [#allocation8], 192, 192, 12
    $region33: #{generator_mlp_forward.1} parent=1 // pred_fallthru
      _
    // Predicated region
    $region34: #{generator_mlp_forward.1} parent=1 // pred_check
      _
    $region35: #{generator_mlp_forward.1} parent=1 // pred_check_branch
      %76 = sbr.rel (0) target = $region37
    $region36: #{generator_mlp_forward.1} parent=1 // pred_region
      _
    $region37: #{generator_mlp_forward.1} parent=1 // pred_fallthru
      _
    // Predicated region
    $region38: #{generator_mlp_forward.1} parent=1 // pred_check
      _
    $region39: #{generator_mlp_forward.1} parent=1 // pred_check_branch
      %78 = sbr.rel (0) target = $region41
    $region40: #{generator_mlp_forward.1} parent=1 // pred_region
      %s80 = ssub.s32 18432, 18432
      %81 = vsyncadd [#allocation8], %s80
      %s82 = sshll.u32 [#allocation9], 4
      %s83 = int_to_ptr.vmem [resolvable:$true] %s82
      %88 = dma.hbm_to_vmem [thread:$0]  %s9, 18432, %s83, [#allocation8], 384, 384, 24
    $region41: #{generator_mlp_forward.1} parent=1 // pred_fallthru
      _
    // Predicated region
    $region42: #{generator_mlp_forward.1} parent=1 // pred_check
      _
    $region43: #{generator_mlp_forward.1} parent=1 // pred_check_branch
      %90 = sbr.rel (0) target = $region45
    $region44: #{generator_mlp_forward.1} parent=1 // pred_region
      _
    $region45: #{generator_mlp_forward.1} parent=1 // pred_fallthru
      _
    // Predicated region
    $region46: #{generator_mlp_forward.1} parent=1 // pred_check
      _
    $region47: #{generator_mlp_forward.1} parent=1 // pred_check_branch
      %92 = sbr.rel (0) target = $region49
    $region48: #{generator_mlp_forward.1} parent=1 // pred_region
      %93 = dma.done [#allocation3], 1024
    $region49: #{generator_mlp_forward.1} parent=1 // pred_fallthru
      _
    // Predicated region
    $region50: #{generator_mlp_forward.1} parent=1 // pred_check
      _
    $region51: #{generator_mlp_forward.1} parent=1 // pred_check_branch
      %95 = sbr.rel (0) target = $region53
    $region52: #{generator_mlp_forward.1} parent=1 // pred_region
      %96 = dma.done [#allocation5], 1024
    $region53: #{generator_mlp_forward.1} parent=1 // pred_fallthru
      _
    // Predicated region
    $region54: #{generator_mlp_forward.1} parent=1 // pred_check
      _
    $region55: #{generator_mlp_forward.1} parent=1 // pred_check_branch
      %98 = sbr.rel (0) target = $region57
    $region56: #{generator_mlp_forward.1} parent=1 // pred_region
      %99 = dma.done [#allocation5], 1024
    $region57: #{generator_mlp_forward.1} parent=1 // pred_fallthru
      _
    // Predicated region
    $region58: #{generator_mlp_forward.1} parent=1 // pred_check
      _
    $region59: #{generator_mlp_forward.1} parent=1 // pred_check_branch
      %101 = sbr.rel (0) target = $region61
    $region60: #{generator_mlp_forward.1} parent=1 // pred_region
      %102 = dma.done [#allocation8], 3072
    $region61: #{generator_mlp_forward.1} parent=1 // pred_fallthru
      _
    // Predicated region
    $region62: #{generator_mlp_forward.1} parent=1 // pred_check
      _
    $region63: #{generator_mlp_forward.1} parent=1 // pred_check_branch
      %104 = sbr.rel (0) target = $region65
    $region64: #{generator_mlp_forward.1} parent=1 // pred_region
      %105 = dma.done [#allocation8], 18432
    $region65: #{generator_mlp_forward.1} parent=1 // pred_fallthru
      _
    %v107 = vld [vmem:[%s0] sm:$0xff]
    %v108 = vlaneseq
    %v109 = vshrl.u32 %v108, 7
    %vm110 = vcmp.lt.s32.totalorder %v109, 4
    %v111 = vpack.c.bf16 %v107, %v107
    %v112 = vld [vmem:[#allocation2] sm:$0xf]
    %v113 = vld [vmem:[#allocation2 + $0x4] sm:$0xf]
    %v114 = vld [vmem:[#allocation2 + $0x8] sm:$0xf]
    %v115 = vld [vmem:[#allocation2 + $0xc] sm:$0xf]
    %v116 = vld [vmem:[#allocation2 + $0x10] sm:$0xf]
    %v117 = vld [vmem:[#allocation2 + $0x14] sm:$0xf]
    %v118 = vld [vmem:[#allocation2 + $0x18] sm:$0xf]
    %v119 = vld [vmem:[#allocation2 + $0x1c] sm:$0xf]
    %v120 = vld [vmem:[#allocation2 + $0x20] sm:$0xf]
    %v121 = vld [vmem:[#allocation2 + $0x24] sm:$0xf]
    %v122 = vld [vmem:[#allocation2 + $0x28] sm:$0xf]
    %v123 = vld [vmem:[#allocation2 + $0x2c] sm:$0xf]
    %v124 = vld [vmem:[#allocation2 + $0x30] sm:$0xf]
    %v125 = vld [vmem:[#allocation2 + $0x34] sm:$0xf]
    %v126 = vld [vmem:[#allocation2 + $0x38] sm:$0xf]
    %v127 = vld [vmem:[#allocation2 + $0x3c] sm:$0xf]
    %v128 = vld [vmem:[%s2] sm:$0x1]
    %v130 = vlaneseq
    %v131 = vshrl.u32 %v130, 7
    %v132 = vsub.s32 0, %v131
    %v133 = vrot.slane %v128, %v132
    %v151 = vunpack.c.l.b16 %v112
    %v152 = vunpack.c.l.b16 %v113
    %v153 = vunpack.c.l.b16 %v114
    %v154 = vunpack.c.l.b16 %v115
    %v155 = vunpack.c.l.b16 %v116
    %v156 = vunpack.c.l.b16 %v117
    %v157 = vunpack.c.l.b16 %v118
    %v158 = vunpack.c.l.b16 %v119
    %v159 = vunpack.c.l.b16 %v120
    %v160 = vunpack.c.l.b16 %v121
    %v161 = vunpack.c.l.b16 %v122
    %v162 = vunpack.c.l.b16 %v123
    %v163 = vunpack.c.l.b16 %v124
    %v164 = vunpack.c.l.b16 %v125
    %v165 = vunpack.c.l.b16 %v126
    %v166 = vunpack.c.l.b16 %v127
    %v167 = vpack.c.b16 %v152, %v151
    %v168 = vpack.c.b16 %v154, %v153
    %v169 = vpack.c.b16 %v156, %v155
    %v170 = vpack.c.b16 %v158, %v157
    %v171 = vpack.c.b16 %v160, %v159
    %v172 = vpack.c.b16 %v162, %v161
    %v173 = vpack.c.b16 %v164, %v163
    %v174 = vpack.c.b16 %v166, %v165
    %183 = vmatprep.subr.bf16.mxu0 0
    %184 = vmatpush1.bf16.msra.mxu0 %v167
    %185 = vmatprep.subr.bf16.mxu0 0
    %186 = vmatpush1.bf16.msra.mxu0 %v168
    %187 = vmatprep.subr.bf16.mxu0 0
    %188 = vmatpush1.bf16.msra.mxu0 %v169
    %189 = vmatprep.subr.bf16.mxu0 0
    %190 = vmatpush1.bf16.msra.mxu0 %v170
    %191 = vmatprep.subr.bf16.mxu0 0
    %192 = vmatpush1.bf16.msra.mxu0 %v171
    %193 = vmatprep.subr.bf16.mxu0 0
    %194 = vmatpush1.bf16.msra.mxu0 %v172
    %195 = vmatprep.subr.bf16.mxu0 0
    %196 = vmatpush1.bf16.msra.mxu0 %v173
    %197 = vmatprep.subr.bf16.mxu0 0
    %198 = vmatpush1.bf16.msra.mxu0 %v174
    %199 = vmatprep.subr.bf16.mxu0 0
    %200 = vmatpush1.bf16.msra.mxu0 0
    %201 = vmatprep.subr.bf16.mxu0 0
    %202 = vmatpush1.bf16.msra.mxu0 0
    %203 = vmatprep.subr.bf16.mxu0 0
    %204 = vmatpush1.bf16.msra.mxu0 0
    %205 = vmatprep.subr.bf16.mxu0 0
    %206 = vmatpush1.bf16.msra.mxu0 0
    %207 = vmatprep.subr.bf16.mxu0 0
    %208 = vmatpush1.bf16.msra.mxu0 0
    %209 = vmatprep.subr.bf16.mxu0 0
    %210 = vmatpush1.bf16.msra.mxu0 0
    %211 = vmatprep.subr.bf16.mxu0 0
    %212 = vmatpush1.bf16.msra.mxu0 0
    %213 = vmatprep.subr.bf16.mxu0 0
    %214 = vmatpush1.bf16.msra.mxu0 0
    %215 = vmatprep.mubr.bf16.mxu0 0
    %216 = vmatmul.mubr.bf16.gmra.mrb[0].mxu0 %v111
    %v217 = vpop.f32.mrb[0].mxu0
    %v218 = vadd.f32 %v133, %v217
    %v219 = vpop.f32.mrb[0].mxu0
    %v220 = vpop.f32.mrb[0].mxu0
    %v221 = vpop.f32.mrb[0].mxu0
    %222 = vdwg.mxu0
    %vm223 = vcmp.ge.f32.partialorder %v218, 0.0
    %v224 = vmul.f32 %v218, 0.2
    %v225 = vsel %vm223, %v218, %v224
    %v226 = vpack.c.bf16 %v225, %v225
    %v227 = vld [vmem:[#allocation4] sm:$0xf]
    %v228 = vld [vmem:[#allocation4 + $0x4] sm:$0xf]
    %v229 = vld [vmem:[#allocation4 + $0x8] sm:$0xf]
    %v230 = vld [vmem:[#allocation4 + $0xc] sm:$0xf]
    %v231 = vld [vmem:[#allocation4 + $0x10] sm:$0xf]
    %v232 = vld [vmem:[#allocation4 + $0x14] sm:$0xf]
    %v233 = vld [vmem:[#allocation4 + $0x18] sm:$0xf]
    %v234 = vld [vmem:[#allocation4 + $0x1c] sm:$0xf]
    %v235 = vld [vmem:[#allocation4 + $0x20] sm:$0xf]
    %v236 = vld [vmem:[#allocation4 + $0x24] sm:$0xf]
    %v237 = vld [vmem:[#allocation4 + $0x28] sm:$0xf]
    %v238 = vld [vmem:[#allocation4 + $0x2c] sm:$0xf]
    %v239 = vld [vmem:[#allocation4 + $0x30] sm:$0xf]
    %v240 = vld [vmem:[#allocation4 + $0x34] sm:$0xf]
    %v241 = vld [vmem:[#allocation4 + $0x38] sm:$0xf]
    %v242 = vld [vmem:[#allocation4 + $0x3c] sm:$0xf]
    %v243 = vld [vmem:[%s4] sm:$0x1]
    %v245 = vlaneseq
    %v246 = vshrl.u32 %v245, 7
    %v247 = vsub.s32 0, %v246
    %v248 = vrot.slane %v243, %v247
    %v266 = vunpack.c.l.b16 %v227
    %v267 = vunpack.c.l.b16 %v228
    %v268 = vunpack.c.l.b16 %v229
    %v269 = vunpack.c.l.b16 %v230
    %v270 = vunpack.c.l.b16 %v231
    %v271 = vunpack.c.l.b16 %v232
    %v272 = vunpack.c.l.b16 %v233
    %v273 = vunpack.c.l.b16 %v234
    %v274 = vunpack.c.l.b16 %v235
    %v275 = vunpack.c.l.b16 %v236
    %v276 = vunpack.c.l.b16 %v237
    %v277 = vunpack.c.l.b16 %v238
    %v278 = vunpack.c.l.b16 %v239
    %v279 = vunpack.c.l.b16 %v240
    %v280 = vunpack.c.l.b16 %v241
    %v281 = vunpack.c.l.b16 %v242
    %v282 = vpack.c.b16 %v267, %v266
    %v283 = vpack.c.b16 %v269, %v268
    %v284 = vpack.c.b16 %v271, %v270
    %v285 = vpack.c.b16 %v273, %v272
    %v286 = vpack.c.b16 %v275, %v274
    %v287 = vpack.c.b16 %v277, %v276
    %v288 = vpack.c.b16 %v279, %v278
    %v289 = vpack.c.b16 %v281, %v280
    %298 = vmatprep.subr.bf16.mxu0 0
    %299 = vmatpush1.bf16.msra.mxu0 %v282
    %300 = vmatprep.subr.bf16.mxu0 0
    %301 = vmatpush1.bf16.msra.mxu0 %v283
    %302 = vmatprep.subr.bf16.mxu0 0
    %303 = vmatpush1.bf16.msra.mxu0 %v284
    %304 = vmatprep.subr.bf16.mxu0 0
    %305 = vmatpush1.bf16.msra.mxu0 %v285
    %306 = vmatprep.subr.bf16.mxu0 0
    %307 = vmatpush1.bf16.msra.mxu0 %v286
    %308 = vmatprep.subr.bf16.mxu0 0
    %309 = vmatpush1.bf16.msra.mxu0 %v287
    %310 = vmatprep.subr.bf16.mxu0 0
    %311 = vmatpush1.bf16.msra.mxu0 %v288
    %312 = vmatprep.subr.bf16.mxu0 0
    %313 = vmatpush1.bf16.msra.mxu0 %v289
    %314 = vmatprep.subr.bf16.mxu0 0
    %315 = vmatpush1.bf16.msra.mxu0 0
    %316 = vmatprep.subr.bf16.mxu0 0
    %317 = vmatpush1.bf16.msra.mxu0 0
    %318 = vmatprep.subr.bf16.mxu0 0
    %319 = vmatpush1.bf16.msra.mxu0 0
    %320 = vmatprep.subr.bf16.mxu0 0
    %321 = vmatpush1.bf16.msra.mxu0 0
    %322 = vmatprep.subr.bf16.mxu0 0
    %323 = vmatpush1.bf16.msra.mxu0 0
    %324 = vmatprep.subr.bf16.mxu0 0
    %325 = vmatpush1.bf16.msra.mxu0 0
    %326 = vmatprep.subr.bf16.mxu0 0
    %327 = vmatpush1.bf16.msra.mxu0 0
    %328 = vmatprep.subr.bf16.mxu0 0
    %329 = vmatpush1.bf16.msra.mxu0 0
    %330 = vmatprep.mubr.bf16.mxu0 0
    %331 = vmatmul.mubr.bf16.gmra.mrb[0].mxu0 %v226
    %v332 = vpop.f32.mrb[0].mxu0
    %v333 = vadd.f32 %v248, %v332
    %v334 = vpop.f32.mrb[0].mxu0
    %v335 = vpop.f32.mrb[0].mxu0
    %v336 = vpop.f32.mrb[0].mxu0
    %337 = vdwg.mxu0
    %v338 = vsel %vm110, 1, 0
    %vm339 = vcmp.eq.s32.totalorder %v338, 1
    %v340 = vsel %vm339, %v333, 0.0
    %v341 = vrot.slane %v340, 4
    %v342 = vadd.f32 %v340, %v341
    %v343 = vrot.slane %v342, 2
    %v344 = vadd.f32 %v342, %v343
    %v345 = vrot.slane %v344, 1
    %v346 = vadd.f32 %v344, %v345
    %v347 = vmul.f32 %v340, %v340
    %v348 = vrot.slane %v347, 4
    %v349 = vadd.f32 %v347, %v348
    %v350 = vrot.slane %v349, 2
    %v351 = vadd.f32 %v349, %v350
    %v352 = vrot.slane %v351, 1
    %v353 = vadd.f32 %v351, %v352
    %v354 = vmul.f32 %v346, 0.25
    %v355 = vmul.f32 %v353, 0.25
    %v356 = vmul.f32 %v354, %v354
    %v357 = vsub.f32 %v355, %v356
    %v358 = vsub.f32 %v333, %v354
    %v359 = vadd.f32 %v357, 0.8
    %v360 = vrsqrt.pop %v359
    %v361 = vmul.f32 %v358, %v360
    %vm362 = vcmp.ge.f32.partialorder %v361, 0.0
    %v363 = vmul.f32 %v361, 0.2
    %v364 = vsel %vm362, %v361, %v363
    %v365 = vpack.c.bf16 %v364, %v364
    %v366 = vld [vmem:[#allocation6] sm:$0xf]
    %v367 = vld [vmem:[#allocation6 + $0x4] sm:$0xf]
    %v368 = vld [vmem:[#allocation6 + $0x8] sm:$0xf]
    %v369 = vld [vmem:[#allocation6 + $0xc] sm:$0xf]
    %v370 = vld [vmem:[#allocation6 + $0x10] sm:$0xf]
    %v371 = vld [vmem:[#allocation6 + $0x14] sm:$0xf]
    %v372 = vld [vmem:[#allocation6 + $0x18] sm:$0xf]
    %v373 = vld [vmem:[#allocation6 + $0x1c] sm:$0xf]
    %v374 = vld [vmem:[#allocation6 + $0x20] sm:$0xf]
    %v375 = vld [vmem:[#allocation6 + $0x24] sm:$0xf]
    %v376 = vld [vmem:[#allocation6 + $0x28] sm:$0xf]
    %v377 = vld [vmem:[#allocation6 + $0x2c] sm:$0xf]
    %v378 = vld [vmem:[#allocation6 + $0x30] sm:$0xf]
    %v379 = vld [vmem:[#allocation6 + $0x34] sm:$0xf]
    %v380 = vld [vmem:[#allocation6 + $0x38] sm:$0xf]
    %v381 = vld [vmem:[#allocation6 + $0x3c] sm:$0xf]
    %v382 = vld [vmem:[%s6] sm:$0x1]
    %v384 = vlaneseq
    %v385 = vshrl.u32 %v384, 7
    %v386 = vsub.s32 0, %v385
    %v387 = vrot.slane %v382, %v386
    %v405 = vunpack.c.l.b16 %v366
    %v406 = vunpack.c.l.b16 %v367
    %v407 = vunpack.c.l.b16 %v368
    %v408 = vunpack.c.l.b16 %v369
    %v409 = vunpack.c.l.b16 %v370
    %v410 = vunpack.c.l.b16 %v371
    %v411 = vunpack.c.l.b16 %v372
    %v412 = vunpack.c.l.b16 %v373
    %v413 = vunpack.c.l.b16 %v374
    %v414 = vunpack.c.l.b16 %v375
    %v415 = vunpack.c.l.b16 %v376
    %v416 = vunpack.c.l.b16 %v377
    %v417 = vunpack.c.l.b16 %v378
    %v418 = vunpack.c.l.b16 %v379
    %v419 = vunpack.c.l.b16 %v380
    %v420 = vunpack.c.l.b16 %v381
    %v421 = vpack.c.b16 %v406, %v405
    %v422 = vpack.c.b16 %v408, %v407
    %v423 = vpack.c.b16 %v410, %v409
    %v424 = vpack.c.b16 %v412, %v411
    %v425 = vpack.c.b16 %v414, %v413
    %v426 = vpack.c.b16 %v416, %v415
    %v427 = vpack.c.b16 %v418, %v417
    %v428 = vpack.c.b16 %v420, %v419
    %437 = vmatprep.subr.bf16.mxu0 0
    %438 = vmatpush1.bf16.msra.mxu0 %v421
    %439 = vmatprep.subr.bf16.mxu0 0
    %440 = vmatpush1.bf16.msra.mxu0 %v422
    %441 = vmatprep.subr.bf16.mxu0 0
    %442 = vmatpush1.bf16.msra.mxu0 %v423
    %443 = vmatprep.subr.bf16.mxu0 0
    %444 = vmatpush1.bf16.msra.mxu0 %v424
    %445 = vmatprep.subr.bf16.mxu0 0
    %446 = vmatpush1.bf16.msra.mxu0 %v425
    %447 = vmatprep.subr.bf16.mxu0 0
    %448 = vmatpush1.bf16.msra.mxu0 %v426
    %449 = vmatprep.subr.bf16.mxu0 0
    %450 = vmatpush1.bf16.msra.mxu0 %v427
    %451 = vmatprep.subr.bf16.mxu0 0
    %452 = vmatpush1.bf16.msra.mxu0 %v428
    %453 = vmatprep.subr.bf16.mxu0 0
    %454 = vmatpush1.bf16.msra.mxu0 0
    %455 = vmatprep.subr.bf16.mxu0 0
    %456 = vmatpush1.bf16.msra.mxu0 0
    %457 = vmatprep.subr.bf16.mxu0 0
    %458 = vmatpush1.bf16.msra.mxu0 0
    %459 = vmatprep.subr.bf16.mxu0 0
    %460 = vmatpush1.bf16.msra.mxu0 0
    %461 = vmatprep.subr.bf16.mxu0 0
    %462 = vmatpush1.bf16.msra.mxu0 0
    %463 = vmatprep.subr.bf16.mxu0 0
    %464 = vmatpush1.bf16.msra.mxu0 0
    %465 = vmatprep.subr.bf16.mxu0 0
    %466 = vmatpush1.bf16.msra.mxu0 0
    %467 = vmatprep.subr.bf16.mxu0 0
    %468 = vmatpush1.bf16.msra.mxu0 0
    %469 = vmatprep.mubr.bf16.mxu0 0
    %470 = vmatmul.mubr.bf16.gmra.mrb[0].mxu0 %v365
    %v471 = vpop.f32.mrb[0].mxu0
    %v472 = vadd.f32 %v387, %v471
    %v473 = vpop.f32.mrb[0].mxu0
    %v474 = vpop.f32.mrb[0].mxu0
    %v475 = vpop.f32.mrb[0].mxu0
    %476 = vdwg.mxu0
    %v477 = vsel %vm339, %v472, 0.0
    %v478 = vrot.slane %v477, 4
    %v479 = vadd.f32 %v477, %v478
    %v480 = vrot.slane %v479, 2
    %v481 = vadd.f32 %v479, %v480
    %v482 = vrot.slane %v481, 1
    %v483 = vadd.f32 %v481, %v482
    %v484 = vmul.f32 %v477, %v477
    %v485 = vrot.slane %v484, 4
    %v486 = vadd.f32 %v484, %v485
    %v487 = vrot.slane %v486, 2
    %v488 = vadd.f32 %v486, %v487
    %v489 = vrot.slane %v488, 1
    %v490 = vadd.f32 %v488, %v489
    %v491 = vmul.f32 %v483, 0.25
    %v492 = vmul.f32 %v490, 0.25
    %v493 = vmul.f32 %v491, %v491
    %v494 = vsub.f32 %v492, %v493
    %v495 = vsub.f32 %v472, %v491
    %v496 = vadd.f32 %v494, 0.8
    %v497 = vrsqrt.pop %v496
    %v498 = vmul.f32 %v495, %v497
    %vm499 = vcmp.ge.f32.partialorder %v498, 0.0
    %v500 = vmul.f32 %v498, 0.2
    %v501 = vsel %vm499, %v498, %v500
    %v502 = vpack.c.bf16 %v501, %v501
    %v503 = vld [vmem:[#allocation7] sm:$0xff]
    %v504 = vld [vmem:[#allocation7 + $0x8] sm:$0xf]
    %v505 = vld [vmem:[#allocation7 + $0xc] sm:$0xff]
    %v506 = vld [vmem:[#allocation7 + $0x14] sm:$0xf]
    %v507 = vld [vmem:[#allocation7 + $0x18] sm:$0xff]
    %v508 = vld [vmem:[#allocation7 + $0x20] sm:$0xf]
    %v509 = vld [vmem:[#allocation7 + $0x24] sm:$0xff]
    %v510 = vld [vmem:[#allocation7 + $0x2c] sm:$0xf]
    %v511 = vld [vmem:[#allocation7 + $0x30] sm:$0xff]
    %v512 = vld [vmem:[#allocation7 + $0x38] sm:$0xf]
    %v513 = vld [vmem:[#allocation7 + $0x3c] sm:$0xff]
    %v514 = vld [vmem:[#allocation7 + $0x44] sm:$0xf]
    %v515 = vld [vmem:[#allocation7 + $0x48] sm:$0xff]
    %v516 = vld [vmem:[#allocation7 + $0x50] sm:$0xf]
    %v517 = vld [vmem:[#allocation7 + $0x54] sm:$0xff]
    %v518 = vld [vmem:[#allocation7 + $0x5c] sm:$0xf]
    %v519 = vld [vmem:[#allocation7 + $0x60] sm:$0xff]
    %v520 = vld [vmem:[#allocation7 + $0x68] sm:$0xf]
    %v521 = vld [vmem:[#allocation7 + $0x6c] sm:$0xff]
    %v522 = vld [vmem:[#allocation7 + $0x74] sm:$0xf]
    %v523 = vld [vmem:[#allocation7 + $0x78] sm:$0xff]
    %v524 = vld [vmem:[#allocation7 + $0x80] sm:$0xf]
    %v525 = vld [vmem:[#allocation7 + $0x84] sm:$0xff]
    %v526 = vld [vmem:[#allocation7 + $0x8c] sm:$0xf]
    %v527 = vld [vmem:[#allocation7 + $0x90] sm:$0xff]
    %v528 = vld [vmem:[#allocation7 + $0x98] sm:$0xf]
    %v529 = vld [vmem:[#allocation7 + $0x9c] sm:$0xff]
    %v530 = vld [vmem:[#allocation7 + $0xa4] sm:$0xf]
    %v531 = vld [vmem:[#allocation7 + $0xa8] sm:$0xff]
    %v532 = vld [vmem:[#allocation7 + $0xb0] sm:$0xf]
    %v533 = vld [vmem:[#allocation7 + $0xb4] sm:$0xff]
    %v534 = vld [vmem:[#allocation7 + $0xbc] sm:$0xf]
    %v535 = vld [vmem:[%s8] sm:$0x7]
    %v537 = vlaneseq
    %v538 = vshrl.u32 %v537, 7
    %v539 = vsub.s32 0, %v538
    %v540 = vrot.slane %v535, %v539
    %v541 = vlaneseq
    %v542 = vshrl.u32 %v541, 7
    %v543 = vsub.s32 1, %v542
    %v544 = vrot.slane %v535, %v543
    %v545 = vlaneseq
    %v546 = vshrl.u32 %v545, 7
    %v547 = vsub.s32 2, %v546
    %v548 = vrot.slane %v535, %v547
    %v584 = vunpack.c.l.b16 %v503
    %v585 = vunpack.c.h.b16 %v503
    %v586 = vunpack.c.l.b16 %v504
    %v587 = vunpack.c.l.b16 %v505
    %v588 = vunpack.c.h.b16 %v505
    %v589 = vunpack.c.l.b16 %v506
    %v590 = vunpack.c.l.b16 %v507
    %v591 = vunpack.c.h.b16 %v507
    %v592 = vunpack.c.l.b16 %v508
    %v593 = vunpack.c.l.b16 %v509
    %v594 = vunpack.c.h.b16 %v509
    %v595 = vunpack.c.l.b16 %v510
    %v596 = vunpack.c.l.b16 %v511
    %v597 = vunpack.c.h.b16 %v511
    %v598 = vunpack.c.l.b16 %v512
    %v599 = vunpack.c.l.b16 %v513
    %v600 = vunpack.c.h.b16 %v513
    %v601 = vunpack.c.l.b16 %v514
    %v602 = vunpack.c.l.b16 %v515
    %v603 = vunpack.c.h.b16 %v515
    %v604 = vunpack.c.l.b16 %v516
    %v605 = vunpack.c.l.b16 %v517
    %v606 = vunpack.c.h.b16 %v517
    %v607 = vunpack.c.l.b16 %v518
    %v608 = vunpack.c.l.b16 %v519
    %v609 = vunpack.c.h.b16 %v519
    %v610 = vunpack.c.l.b16 %v520
    %v611 = vunpack.c.l.b16 %v521
    %v612 = vunpack.c.h.b16 %v521
    %v613 = vunpack.c.l.b16 %v522
    %v614 = vunpack.c.l.b16 %v523
    %v615 = vunpack.c.h.b16 %v523
    %v616 = vunpack.c.l.b16 %v524
    %v617 = vunpack.c.l.b16 %v525
    %v618 = vunpack.c.h.b16 %v525
    %v619 = vunpack.c.l.b16 %v526
    %v620 = vunpack.c.l.b16 %v527
    %v621 = vunpack.c.h.b16 %v527
    %v622 = vunpack.c.l.b16 %v528
    %v623 = vunpack.c.l.b16 %v529
    %v624 = vunpack.c.h.b16 %v529
    %v625 = vunpack.c.l.b16 %v530
    %v626 = vunpack.c.l.b16 %v531
    %v627 = vunpack.c.h.b16 %v531
    %v628 = vunpack.c.l.b16 %v532
    %v629 = vunpack.c.l.b16 %v533
    %v630 = vunpack.c.h.b16 %v533
    %v631 = vunpack.c.l.b16 %v534
    %v632 = vpack.c.b16 %v587, %v584
    %v633 = vpack.c.b16 %v588, %v585
    %v634 = vpack.c.b16 %v589, %v586
    %v635 = vpack.c.b16 %v593, %v590
    %v636 = vpack.c.b16 %v594, %v591
    %v637 = vpack.c.b16 %v595, %v592
    %v638 = vpack.c.b16 %v599, %v596
    %v639 = vpack.c.b16 %v600, %v597
    %v640 = vpack.c.b16 %v601, %v598
    %v641 = vpack.c.b16 %v605, %v602
    %v642 = vpack.c.b16 %v606, %v603
    %v643 = vpack.c.b16 %v607, %v604
    %v644 = vpack.c.b16 %v611, %v608
    %v645 = vpack.c.b16 %v612, %v609
    %v646 = vpack.c.b16 %v613, %v610
    %v647 = vpack.c.b16 %v617, %v614
    %v648 = vpack.c.b16 %v618, %v615
    %v649 = vpack.c.b16 %v619, %v616
    %v650 = vpack.c.b16 %v623, %v620
    %v651 = vpack.c.b16 %v624, %v621
    %v652 = vpack.c.b16 %v625, %v622
    %v653 = vpack.c.b16 %v629, %v626
    %v654 = vpack.c.b16 %v630, %v627
    %v655 = vpack.c.b16 %v631, %v628
    %680 = vmatprep.subr.bf16.mxu0 %v633
    %681 = vmatpush1.bf16.msra.mxu0 %v632
    %682 = vmatprep.subr.bf16.mxu0 %v636
    %683 = vmatpush1.bf16.msra.mxu0 %v635
    %684 = vmatprep.subr.bf16.mxu0 %v639
    %685 = vmatpush1.bf16.msra.mxu0 %v638
    %686 = vmatprep.subr.bf16.mxu0 %v642
    %687 = vmatpush1.bf16.msra.mxu0 %v641
    %688 = vmatprep.subr.bf16.mxu0 %v645
    %689 = vmatpush1.bf16.msra.mxu0 %v644
    %690 = vmatprep.subr.bf16.mxu0 %v648
    %691 = vmatpush1.bf16.msra.mxu0 %v647
    %692 = vmatprep.subr.bf16.mxu0 %v651
    %693 = vmatpush1.bf16.msra.mxu0 %v650
    %694 = vmatprep.subr.bf16.mxu0 %v654
    %695 = vmatpush1.bf16.msra.mxu0 %v653
    %696 = vmatprep.subr.bf16.mxu0 0
    %697 = vmatpush1.bf16.msra.mxu0 0
    %698 = vmatprep.subr.bf16.mxu0 0
    %699 = vmatpush1.bf16.msra.mxu0 0
    %700 = vmatprep.subr.bf16.mxu0 0
    %701 = vmatpush1.bf16.msra.mxu0 0
    %702 = vmatprep.subr.bf16.mxu0 0
    %703 = vmatpush1.bf16.msra.mxu0 0
    %704 = vmatprep.subr.bf16.mxu0 0
    %705 = vmatpush1.bf16.msra.mxu0 0
    %706 = vmatprep.subr.bf16.mxu0 0
    %707 = vmatpush1.bf16.msra.mxu0 0
    %708 = vmatprep.subr.bf16.mxu0 0
    %709 = vmatpush1.bf16.msra.mxu0 0
    %710 = vmatprep.subr.bf16.mxu0 0
    %711 = vmatpush1.bf16.msra.mxu0 0
    %712 = vmatprep.mubr.bf16.mxu0 0
    %713 = vmatmul.mubr.bf16.gmra.mrb[0].mxu0 %v502
    %v714 = vpop.f32.mrb[0].mxu0
    %v715 = vadd.f32 %v540, %v714
    %v716 = vpop.f32.mrb[0].mxu0
    %v717 = vadd.f32 %v544, %v716
    %v718 = vpop.f32.mrb[0].mxu0
    %v719 = vpop.f32.mrb[0].mxu0
    %720 = vdwg.mxu0
    %721 = vmatprep.subr.bf16.mxu0 0
    %722 = vmatpush1.bf16.msra.mxu0 %v634
    %723 = vmatprep.subr.bf16.mxu0 0
    %724 = vmatpush1.bf16.msra.mxu0 %v637
    %725 = vmatprep.subr.bf16.mxu0 0
    %726 = vmatpush1.bf16.msra.mxu0 %v640
    %727 = vmatprep.subr.bf16.mxu0 0
    %728 = vmatpush1.bf16.msra.mxu0 %v643
    %729 = vmatprep.subr.bf16.mxu0 0
    %730 = vmatpush1.bf16.msra.mxu0 %v646
    %731 = vmatprep.subr.bf16.mxu0 0
    %732 = vmatpush1.bf16.msra.mxu0 %v649
    %733 = vmatprep.subr.bf16.mxu0 0
    %734 = vmatpush1.bf16.msra.mxu0 %v652
    %735 = vmatprep.subr.bf16.mxu0 0
    %736 = vmatpush1.bf16.msra.mxu0 %v655
    %737 = vmatprep.subr.bf16.mxu0 0
    %738 = vmatpush1.bf16.msra.mxu0 0
    %739 = vmatprep.subr.bf16.mxu0 0
    %740 = vmatpush1.bf16.msra.mxu0 0
    %741 = vmatprep.subr.bf16.mxu0 0
    %742 = vmatpush1.bf16.msra.mxu0 0
    %743 = vmatprep.subr.bf16.mxu0 0
    %744 = vmatpush1.bf16.msra.mxu0 0
    %745 = vmatprep.subr.bf16.mxu0 0
    %746 = vmatpush1.bf16.msra.mxu0 0
    %747 = vmatprep.subr.bf16.mxu0 0
    %748 = vmatpush1.bf16.msra.mxu0 0
    %749 = vmatprep.subr.bf16.mxu0 0
    %750 = vmatpush1.bf16.msra.mxu0 0
    %751 = vmatprep.subr.bf16.mxu0 0
    %752 = vmatpush1.bf16.msra.mxu0 0
    %753 = vmatprep.mubr.bf16.mxu0 0
    %754 = vmatmul.mubr.bf16.gmra.mrb[0].mxu0 %v502
    %v755 = vpop.f32.mrb[0].mxu0
    %v756 = vadd.f32 %v548, %v755
    %v757 = vpop.f32.mrb[0].mxu0
    %v758 = vpop.f32.mrb[0].mxu0
    %v759 = vpop.f32.mrb[0].mxu0
    %760 = vdwg.mxu0
    %v761 = vsel %vm339, %v715, 0.0
    %v762 = vsel %vm339, %v717, 0.0
    %v763 = vsel %vm339, %v756, 0.0
    %v764 = vrot.slane %v761, 4
    %v765 = vadd.f32 %v761, %v764
    %v766 = vrot.slane %v765, 2
    %v767 = vadd.f32 %v765, %v766
    %v768 = vrot.slane %v767, 1
    %v769 = vadd.f32 %v767, %v768
    %v770 = vrot.slane %v762, 4
    %v771 = vadd.f32 %v762, %v770
    %v772 = vrot.slane %v771, 2
    %v773 = vadd.f32 %v771, %v772
    %v774 = vrot.slane %v773, 1
    %v775 = vadd.f32 %v773, %v774
    %v776 = vrot.slane %v763, 4
    %v777 = vadd.f32 %v763, %v776
    %v778 = vrot.slane %v777, 2
    %v779 = vadd.f32 %v777, %v778
    %v780 = vrot.slane %v779, 1
    %v781 = vadd.f32 %v779, %v780
    %v782 = vmul.f32 %v761, %v761
    %v783 = vmul.f32 %v762, %v762
    %v784 = vmul.f32 %v763, %v763
    %v785 = vrot.slane %v782, 4
    %v786 = vadd.f32 %v782, %v785
    %v787 = vrot.slane %v786, 2
    %v788 = vadd.f32 %v786, %v787
    %v789 = vrot.slane %v788, 1
    %v790 = vadd.f32 %v788, %v789
    %v791 = vrot.slane %v783, 4
    %v792 = vadd.f32 %v783, %v791
    %v793 = vrot.slane %v792, 2
    %v794 = vadd.f32 %v792, %v793
    %v795 = vrot.slane %v794, 1
    %v796 = vadd.f32 %v794, %v795
    %v797 = vrot.slane %v784, 4
    %v798 = vadd.f32 %v784, %v797
    %v799 = vrot.slane %v798, 2
    %v800 = vadd.f32 %v798, %v799
    %v801 = vrot.slane %v800, 1
    %v802 = vadd.f32 %v800, %v801
    %v803 = vmul.f32 %v769, 0.25
    %v804 = vmul.f32 %v775, 0.25
    %v805 = vmul.f32 %v781, 0.25
    %v806 = vmul.f32 %v790, 0.25
    %v807 = vmul.f32 %v796, 0.25
    %v808 = vmul.f32 %v802, 0.25
    %v809 = vmul.f32 %v803, %v803
    %v810 = vmul.f32 %v804, %v804
    %v811 = vmul.f32 %v805, %v805
    %v812 = vsub.f32 %v806, %v809
    %v813 = vsub.f32 %v807, %v810
    %v814 = vsub.f32 %v808, %v811
    %v815 = vsub.f32 %v715, %v803
    %v816 = vsub.f32 %v717, %v804
    %v817 = vsub.f32 %v756, %v805
    %v818 = vadd.f32 %v812, 0.8
    %v819 = vadd.f32 %v813, 0.8
    %v820 = vadd.f32 %v814, 0.8
    %v821 = vrsqrt.pop %v818
    %v822 = vrsqrt.pop %v819
    %v823 = vrsqrt.pop %v820
    %v824 = vmul.f32 %v815, %v821
    %v825 = vmul.f32 %v816, %v822
    %v826 = vmul.f32 %v817, %v823
    %vm827 = vcmp.ge.f32.partialorder %v824, 0.0
    %vm828 = vcmp.ge.f32.partialorder %v825, 0.0
    %vm829 = vcmp.ge.f32.partialorder %v826, 0.0
    %v830 = vmul.f32 %v824, 0.2
    %v831 = vmul.f32 %v825, 0.2
    %v832 = vmul.f32 %v826, 0.2
    %v833 = vsel %vm827, %v824, %v830
    %v834 = vsel %vm828, %v825, %v831
    %v835 = vsel %vm829, %v826, %v832
    %v836 = vpack.c.bf16 %v833, %v833
    %v837 = vpack.c.bf16 %v834, %v834
    %v838 = vpack.c.bf16 %v835, %v835
    %v839 = vld [vmem:[#allocation9] sm:$0xff]
    %v840 = vld [vmem:[#allocation9 + $0x8] sm:$0xff]
    %v841 = vld [vmem:[#allocation9 + $0x10] sm:$0xff]
    %v842 = vld [vmem:[#allocation9 + $0x18] sm:$0xff]
    %v843 = vld [vmem:[#allocation9 + $0x20] sm:$0xff]
    %v844 = vld [vmem:[#allocation9 + $0x28] sm:$0xff]
    %v845 = vld [vmem:[#allocation9 + $0x30] sm:$0xff]
    %v846 = vld [vmem:[#allocation9 + $0x38] sm:$0xff]
    %v847 = vld [vmem:[#allocation9 + $0x40] sm:$0xff]
    %v848 = vld [vmem:[#allocation9 + $0x48] sm:$0xff]
    %v849 = vld [vmem:[#allocation9 + $0x50] sm:$0xff]
    %v850 = vld [vmem:[#allocation9 + $0x58] sm:$0xff]
    %v851 = vld [vmem:[#allocation9 + $0x60] sm:$0xff]
    %v852 = vld [vmem:[#allocation9 + $0x68] sm:$0xff]
    %v853 = vld [vmem:[#allocation9 + $0x70] sm:$0xff]
    %v854 = vld [vmem:[#allocation9 + $0x78] sm:$0xff]
    %v855 = vld [vmem:[#allocation9 + $0x80] sm:$0xff]
    %v856 = vld [vmem:[#allocation9 + $0x88] sm:$0xff]
    %v857 = vld [vmem:[#allocation9 + $0x90] sm:$0xff]
    %v858 = vld [vmem:[#allocation9 + $0x98] sm:$0xff]
    %v859 = vld [vmem:[#allocation9 + $0xa0] sm:$0xff]
    %v860 = vld [vmem:[#allocation9 + $0xa8] sm:$0xff]
    %v861 = vld [vmem:[#allocation9 + $0xb0] sm:$0xff]
    %v862 = vld [vmem:[#allocation9 + $0xb8] sm:$0xff]
    %v863 = vld [vmem:[#allocation9 + $0xc0] sm:$0xff]
    %v864 = vld [vmem:[#allocation9 + $0xc8] sm:$0xff]
    %v865 = vld [vmem:[#allocation9 + $0xd0] sm:$0xff]
    %v866 = vld [vmem:[#allocation9 + $0xd8] sm:$0xff]
    %v867 = vld [vmem:[#allocation9 + $0xe0] sm:$0xff]
    %v868 = vld [vmem:[#allocation9 + $0xe8] sm:$0xff]
    %v869 = vld [vmem:[#allocation9 + $0xf0] sm:$0xff]
    %v870 = vld [vmem:[#allocation9 + $0xf8] sm:$0xff]
    %v871 = vld [vmem:[#allocation9 + $0x100] sm:$0xff]
    %v872 = vld [vmem:[#allocation9 + $0x108] sm:$0xff]
    %v873 = vld [vmem:[#allocation9 + $0x110] sm:$0xff]
    %v874 = vld [vmem:[#allocation9 + $0x118] sm:$0xff]
    %v875 = vld [vmem:[#allocation9 + $0x120] sm:$0xff]
    %v876 = vld [vmem:[#allocation9 + $0x128] sm:$0xff]
    %v877 = vld [vmem:[#allocation9 + $0x130] sm:$0xff]
    %v878 = vld [vmem:[#allocation9 + $0x138] sm:$0xff]
    %v879 = vld [vmem:[#allocation9 + $0x140] sm:$0xff]
    %v880 = vld [vmem:[#allocation9 + $0x148] sm:$0xff]
    %v881 = vld [vmem:[#allocation9 + $0x150] sm:$0xff]
    %v882 = vld [vmem:[#allocation9 + $0x158] sm:$0xff]
    %v883 = vld [vmem:[#allocation9 + $0x160] sm:$0xff]
    %v884 = vld [vmem:[#allocation9 + $0x168] sm:$0xff]
    %v885 = vld [vmem:[#allocation9 + $0x170] sm:$0xff]
    %v886 = vld [vmem:[#allocation9 + $0x178] sm:$0xff]
    %v887 = vld [vmem:[#allocation9 + $0x180] sm:$0xff]
    %v888 = vld [vmem:[#allocation9 + $0x188] sm:$0xff]
    %v889 = vld [vmem:[#allocation9 + $0x190] sm:$0xff]
    %v890 = vld [vmem:[#allocation9 + $0x198] sm:$0xff]
    %v891 = vld [vmem:[#allocation9 + $0x1a0] sm:$0xff]
    %v892 = vld [vmem:[#allocation9 + $0x1a8] sm:$0xff]
    %v893 = vld [vmem:[#allocation9 + $0x1b0] sm:$0xff]
    %v894 = vld [vmem:[#allocation9 + $0x1b8] sm:$0xff]
    %v895 = vld [vmem:[#allocation9 + $0x1c0] sm:$0xff]
    %v896 = vld [vmem:[#allocation9 + $0x1c8] sm:$0xff]
    %v897 = vld [vmem:[#allocation9 + $0x1d0] sm:$0xff]
    %v898 = vld [vmem:[#allocation9 + $0x1d8] sm:$0xff]
    %v899 = vld [vmem:[#allocation9 + $0x1e0] sm:$0xff]
    %v900 = vld [vmem:[#allocation9 + $0x1e8] sm:$0xff]
    %v901 = vld [vmem:[#allocation9 + $0x1f0] sm:$0xff]
    %v902 = vld [vmem:[#allocation9 + $0x1f8] sm:$0xff]
    %v903 = vld [vmem:[#allocation9 + $0x200] sm:$0xff]
    %v904 = vld [vmem:[#allocation9 + $0x208] sm:$0xff]
    %v905 = vld [vmem:[#allocation9 + $0x210] sm:$0xff]
    %v906 = vld [vmem:[#allocation9 + $0x218] sm:$0xff]
    %v907 = vld [vmem:[#allocation9 + $0x220] sm:$0xff]
    %v908 = vld [vmem:[#allocation9 + $0x228] sm:$0xff]
    %v909 = vld [vmem:[#allocation9 + $0x230] sm:$0xff]
    %v910 = vld [vmem:[#allocation9 + $0x238] sm:$0xff]
    %v911 = vld [vmem:[#allocation9 + $0x240] sm:$0xff]
    %v912 = vld [vmem:[#allocation9 + $0x248] sm:$0xff]
    %v913 = vld [vmem:[#allocation9 + $0x250] sm:$0xff]
    %v914 = vld [vmem:[#allocation9 + $0x258] sm:$0xff]
    %v915 = vld [vmem:[#allocation9 + $0x260] sm:$0xff]
    %v916 = vld [vmem:[#allocation9 + $0x268] sm:$0xff]
    %v917 = vld [vmem:[#allocation9 + $0x270] sm:$0xff]
    %v918 = vld [vmem:[#allocation9 + $0x278] sm:$0xff]
    %v919 = vld [vmem:[#allocation9 + $0x280] sm:$0xff]
    %v920 = vld [vmem:[#allocation9 + $0x288] sm:$0xff]
    %v921 = vld [vmem:[#allocation9 + $0x290] sm:$0xff]
    %v922 = vld [vmem:[#allocation9 + $0x298] sm:$0xff]
    %v923 = vld [vmem:[#allocation9 + $0x2a0] sm:$0xff]
    %v924 = vld [vmem:[#allocation9 + $0x2a8] sm:$0xff]
    %v925 = vld [vmem:[#allocation9 + $0x2b0] sm:$0xff]
    %v926 = vld [vmem:[#allocation9 + $0x2b8] sm:$0xff]
    %v927 = vld [vmem:[#allocation9 + $0x2c0] sm:$0xff]
    %v928 = vld [vmem:[#allocation9 + $0x2c8] sm:$0xff]
    %v929 = vld [vmem:[#allocation9 + $0x2d0] sm:$0xff]
    %v930 = vld [vmem:[#allocation9 + $0x2d8] sm:$0xff]
    %v931 = vld [vmem:[#allocation9 + $0x2e0] sm:$0xff]
    %v932 = vld [vmem:[#allocation9 + $0x2e8] sm:$0xff]
    %v933 = vld [vmem:[#allocation9 + $0x2f0] sm:$0xff]
    %v934 = vld [vmem:[#allocation9 + $0x2f8] sm:$0xff]
    %v935 = vld [vmem:[#allocation9 + $0x300] sm:$0xff]
    %v936 = vld [vmem:[#allocation9 + $0x308] sm:$0xff]
    %v937 = vld [vmem:[#allocation9 + $0x310] sm:$0xff]
    %v938 = vld [vmem:[#allocation9 + $0x318] sm:$0xff]
    %v939 = vld [vmem:[#allocation9 + $0x320] sm:$0xff]
    %v940 = vld [vmem:[#allocation9 + $0x328] sm:$0xff]
    %v941 = vld [vmem:[#allocation9 + $0x330] sm:$0xff]
    %v942 = vld [vmem:[#allocation9 + $0x338] sm:$0xff]
    %v943 = vld [vmem:[#allocation9 + $0x340] sm:$0xff]
    %v944 = vld [vmem:[#allocation9 + $0x348] sm:$0xff]
    %v945 = vld [vmem:[#allocation9 + $0x350] sm:$0xff]
    %v946 = vld [vmem:[#allocation9 + $0x358] sm:$0xff]
    %v947 = vld [vmem:[#allocation9 + $0x360] sm:$0xff]
    %v948 = vld [vmem:[#allocation9 + $0x368] sm:$0xff]
    %v949 = vld [vmem:[#allocation9 + $0x370] sm:$0xff]
    %v950 = vld [vmem:[#allocation9 + $0x378] sm:$0xff]
    %v951 = vld [vmem:[#allocation9 + $0x380] sm:$0xff]
    %v952 = vld [vmem:[#allocation9 + $0x388] sm:$0xff]
    %v953 = vld [vmem:[#allocation9 + $0x390] sm:$0xff]
    %v954 = vld [vmem:[#allocation9 + $0x398] sm:$0xff]
    %v955 = vld [vmem:[#allocation9 + $0x3a0] sm:$0xff]
    %v956 = vld [vmem:[#allocation9 + $0x3a8] sm:$0xff]
    %v957 = vld [vmem:[#allocation9 + $0x3b0] sm:$0xff]
    %v958 = vld [vmem:[#allocation9 + $0x3b8] sm:$0xff]
    %v959 = vld [vmem:[#allocation9 + $0x3c0] sm:$0xff]
    %v960 = vld [vmem:[#allocation9 + $0x3c8] sm:$0xff]
    %v961 = vld [vmem:[#allocation9 + $0x3d0] sm:$0xff]
    %v962 = vld [vmem:[#allocation9 + $0x3d8] sm:$0xff]
    %v963 = vld [vmem:[#allocation9 + $0x3e0] sm:$0xff]
    %v964 = vld [vmem:[#allocation9 + $0x3e8] sm:$0xff]
    %v965 = vld [vmem:[#allocation9 + $0x3f0] sm:$0xff]
    %v966 = vld [vmem:[#allocation9 + $0x3f8] sm:$0xff]
    %v967 = vld [vmem:[#allocation9 + $0x400] sm:$0xff]
    %v968 = vld [vmem:[#allocation9 + $0x408] sm:$0xff]
    %v969 = vld [vmem:[#allocation9 + $0x410] sm:$0xff]
    %v970 = vld [vmem:[#allocation9 + $0x418] sm:$0xff]
    %v971 = vld [vmem:[#allocation9 + $0x420] sm:$0xff]
    %v972 = vld [vmem:[#allocation9 + $0x428] sm:$0xff]
    %v973 = vld [vmem:[#allocation9 + $0x430] sm:$0xff]
    %v974 = vld [vmem:[#allocation9 + $0x438] sm:$0xff]
    %v975 = vld [vmem:[#allocation9 + $0x440] sm:$0xff]
    %v976 = vld [vmem:[#allocation9 + $0x448] sm:$0xff]
    %v977 = vld [vmem:[#allocation9 + $0x450] sm:$0xff]
    %v978 = vld [vmem:[#allocation9 + $0x458] sm:$0xff]
    %v979 = vld [vmem:[#allocation9 + $0x460] sm:$0xff]
    %v980 = vld [vmem:[#allocation9 + $0x468] sm:$0xff]
    %v981 = vld [vmem:[#allocation9 + $0x470] sm:$0xff]
    %v982 = vld [vmem:[#allocation9 + $0x478] sm:$0xff]
    %v983 = vld [vmem:[%s10] sm:$0x3f]
    %v985 = vlaneseq
    %v986 = vshrl.u32 %v985, 7
    %v987 = vsub.s32 0, %v986
    %v988 = vrot.slane %v983, %v987
    %v989 = vlaneseq
    %v990 = vshrl.u32 %v989, 7
    %v991 = vsub.s32 1, %v990
    %v992 = vrot.slane %v983, %v991
    %v993 = vlaneseq
    %v994 = vshrl.u32 %v993, 7
    %v995 = vsub.s32 2, %v994
    %v996 = vrot.slane %v983, %v995
    %v997 = vlaneseq
    %v998 = vshrl.u32 %v997, 7
    %v999 = vsub.s32 3, %v998
    %v1000 = vrot.slane %v983, %v999
    %v1001 = vlaneseq
    %v1002 = vshrl.u32 %v1001, 7
    %v1003 = vsub.s32 4, %v1002
    %v1004 = vrot.slane %v983, %v1003
    %v1005 = vlaneseq
    %v1006 = vshrl.u32 %v1005, 7
    %v1007 = vsub.s32 5, %v1006
    %v1008 = vrot.slane %v983, %v1007
    %v1159 = vunpack.c.l.b16 %v839
    %v1160 = vunpack.c.h.b16 %v839
    %v1161 = vunpack.c.l.b16 %v840
    %v1162 = vunpack.c.h.b16 %v840
    %v1163 = vunpack.c.l.b16 %v841
    %v1164 = vunpack.c.h.b16 %v841
    %v1165 = vunpack.c.l.b16 %v842
    %v1166 = vunpack.c.h.b16 %v842
    %v1167 = vunpack.c.l.b16 %v843
    %v1168 = vunpack.c.h.b16 %v843
    %v1169 = vunpack.c.l.b16 %v844
    %v1170 = vunpack.c.h.b16 %v844
    %v1171 = vunpack.c.l.b16 %v845
    %v1172 = vunpack.c.h.b16 %v845
    %v1173 = vunpack.c.l.b16 %v846
    %v1174 = vunpack.c.h.b16 %v846
    %v1175 = vunpack.c.l.b16 %v847
    %v1176 = vunpack.c.h.b16 %v847
    %v1177 = vunpack.c.l.b16 %v848
    %v1178 = vunpack.c.h.b16 %v848
    %v1179 = vunpack.c.l.b16 %v849
    %v1180 = vunpack.c.h.b16 %v849
    %v1181 = vunpack.c.l.b16 %v850
    %v1182 = vunpack.c.h.b16 %v850
    %v1183 = vunpack.c.l.b16 %v851
    %v1184 = vunpack.c.h.b16 %v851
    %v1185 = vunpack.c.l.b16 %v852
    %v1186 = vunpack.c.h.b16 %v852
    %v1187 = vunpack.c.l.b16 %v853
    %v1188 = vunpack.c.h.b16 %v853
    %v1189 = vunpack.c.l.b16 %v854
    %v1190 = vunpack.c.h.b16 %v854
    %v1191 = vunpack.c.l.b16 %v855
    %v1192 = vunpack.c.h.b16 %v855
    %v1193 = vunpack.c.l.b16 %v856
    %v1194 = vunpack.c.h.b16 %v856
    %v1195 = vunpack.c.l.b16 %v857
    %v1196 = vunpack.c.h.b16 %v857
    %v1197 = vunpack.c.l.b16 %v858
    %v1198 = vunpack.c.h.b16 %v858
    %v1199 = vunpack.c.l.b16 %v859
    %v1200 = vunpack.c.h.b16 %v859
    %v1201 = vunpack.c.l.b16 %v860
    %v1202 = vunpack.c.h.b16 %v860
    %v1203 = vunpack.c.l.b16 %v861
    %v1204 = vunpack.c.h.b16 %v861
    %v1205 = vunpack.c.l.b16 %v862
    %v1206 = vunpack.c.h.b16 %v862
    %v1207 = vunpack.c.l.b16 %v863
    %v1208 = vunpack.c.h.b16 %v863
    %v1209 = vunpack.c.l.b16 %v864
    %v1210 = vunpack.c.h.b16 %v864
    %v1211 = vunpack.c.l.b16 %v865
    %v1212 = vunpack.c.h.b16 %v865
    %v1213 = vunpack.c.l.b16 %v866
    %v1214 = vunpack.c.h.b16 %v866
    %v1215 = vunpack.c.l.b16 %v867
    %v1216 = vunpack.c.h.b16 %v867
    %v1217 = vunpack.c.l.b16 %v868
    %v1218 = vunpack.c.h.b16 %v868
    %v1219 = vunpack.c.l.b16 %v869
    %v1220 = vunpack.c.h.b16 %v869
    %v1221 = vunpack.c.l.b16 %v870
    %v1222 = vunpack.c.h.b16 %v870
    %v1223 = vunpack.c.l.b16 %v871
    %v1224 = vunpack.c.h.b16 %v871
    %v1225 = vunpack.c.l.b16 %v872
    %v1226 = vunpack.c.h.b16 %v872
    %v1227 = vunpack.c.l.b16 %v873
    %v1228 = vunpack.c.h.b16 %v873
    %v1229 = vunpack.c.l.b16 %v874
    %v1230 = vunpack.c.h.b16 %v874
    %v1231 = vunpack.c.l.b16 %v875
    %v1232 = vunpack.c.h.b16 %v875
    %v1233 = vunpack.c.l.b16 %v876
    %v1234 = vunpack.c.h.b16 %v876
    %v1235 = vunpack.c.l.b16 %v877
    %v1236 = vunpack.c.h.b16 %v877
    %v1237 = vunpack.c.l.b16 %v878
    %v1238 = vunpack.c.h.b16 %v878
    %v1239 = vunpack.c.l.b16 %v879
    %v1240 = vunpack.c.h.b16 %v879
    %v1241 = vunpack.c.l.b16 %v880
    %v1242 = vunpack.c.h.b16 %v880
    %v1243 = vunpack.c.l.b16 %v881
    %v1244 = vunpack.c.h.b16 %v881
    %v1245 = vunpack.c.l.b16 %v882
    %v1246 = vunpack.c.h.b16 %v882
    %v1247 = vunpack.c.l.b16 %v883
    %v1248 = vunpack.c.h.b16 %v883
    %v1249 = vunpack.c.l.b16 %v884
    %v1250 = vunpack.c.h.b16 %v884
    %v1251 = vunpack.c.l.b16 %v885
    %v1252 = vunpack.c.h.b16 %v885
    %v1253 = vunpack.c.l.b16 %v886
    %v1254 = vunpack.c.h.b16 %v886
    %v1255 = vunpack.c.l.b16 %v887
    %v1256 = vunpack.c.h.b16 %v887
    %v1257 = vunpack.c.l.b16 %v888
    %v1258 = vunpack.c.h.b16 %v888
    %v1259 = vunpack.c.l.b16 %v889
    %v1260 = vunpack.c.h.b16 %v889
    %v1261 = vunpack.c.l.b16 %v890
    %v1262 = vunpack.c.h.b16 %v890
    %v1263 = vunpack.c.l.b16 %v891
    %v1264 = vunpack.c.h.b16 %v891
    %v1265 = vunpack.c.l.b16 %v892
    %v1266 = vunpack.c.h.b16 %v892
    %v1267 = vunpack.c.l.b16 %v893
    %v1268 = vunpack.c.h.b16 %v893
    %v1269 = vunpack.c.l.b16 %v894
    %v1270 = vunpack.c.h.b16 %v894
    %v1271 = vunpack.c.l.b16 %v895
    %v1272 = vunpack.c.h.b16 %v895
    %v1273 = vunpack.c.l.b16 %v896
    %v1274 = vunpack.c.h.b16 %v896
    %v1275 = vunpack.c.l.b16 %v897
    %v1276 = vunpack.c.h.b16 %v897
    %v1277 = vunpack.c.l.b16 %v898
    %v1278 = vunpack.c.h.b16 %v898
    %v1279 = vunpack.c.l.b16 %v899
    %v1280 = vunpack.c.h.b16 %v899
    %v1281 = vunpack.c.l.b16 %v900
    %v1282 = vunpack.c.h.b16 %v900
    %v1283 = vunpack.c.l.b16 %v901
    %v1284 = vunpack.c.h.b16 %v901
    %v1285 = vunpack.c.l.b16 %v902
    %v1286 = vunpack.c.h.b16 %v902
    %v1287 = vunpack.c.l.b16 %v903
    %v1288 = vunpack.c.h.b16 %v903
    %v1289 = vunpack.c.l.b16 %v904
    %v1290 = vunpack.c.h.b16 %v904
    %v1291 = vunpack.c.l.b16 %v905
    %v1292 = vunpack.c.h.b16 %v905
    %v1293 = vunpack.c.l.b16 %v906
    %v1294 = vunpack.c.h.b16 %v906
    %v1295 = vunpack.c.l.b16 %v907
    %v1296 = vunpack.c.h.b16 %v907
    %v1297 = vunpack.c.l.b16 %v908
    %v1298 = vunpack.c.h.b16 %v908
    %v1299 = vunpack.c.l.b16 %v909
    %v1300 = vunpack.c.h.b16 %v909
    %v1301 = vunpack.c.l.b16 %v910
    %v1302 = vunpack.c.h.b16 %v910
    %v1303 = vunpack.c.l.b16 %v911
    %v1304 = vunpack.c.h.b16 %v911
    %v1305 = vunpack.c.l.b16 %v912
    %v1306 = vunpack.c.h.b16 %v912
    %v1307 = vunpack.c.l.b16 %v913
    %v1308 = vunpack.c.h.b16 %v913
    %v1309 = vunpack.c.l.b16 %v914
    %v1310 = vunpack.c.h.b16 %v914
    %v1311 = vunpack.c.l.b16 %v915
    %v1312 = vunpack.c.h.b16 %v915
    %v1313 = vunpack.c.l.b16 %v916
    %v1314 = vunpack.c.h.b16 %v916
    %v1315 = vunpack.c.l.b16 %v917
    %v1316 = vunpack.c.h.b16 %v917
    %v1317 = vunpack.c.l.b16 %v918
    %v1318 = vunpack.c.h.b16 %v918
    %v1319 = vunpack.c.l.b16 %v919
    %v1320 = vunpack.c.h.b16 %v919
    %v1321 = vunpack.c.l.b16 %v920
    %v1322 = vunpack.c.h.b16 %v920
    %v1323 = vunpack.c.l.b16 %v921
    %v1324 = vunpack.c.h.b16 %v921
    %v1325 = vunpack.c.l.b16 %v922
    %v1326 = vunpack.c.h.b16 %v922
    %v1327 = vunpack.c.l.b16 %v923
    %v1328 = vunpack.c.h.b16 %v923
    %v1329 = vunpack.c.l.b16 %v924
    %v1330 = vunpack.c.h.b16 %v924
    %v1331 = vunpack.c.l.b16 %v925
    %v1332 = vunpack.c.h.b16 %v925
    %v1333 = vunpack.c.l.b16 %v926
    %v1334 = vunpack.c.h.b16 %v926
    %v1335 = vunpack.c.l.b16 %v927
    %v1336 = vunpack.c.h.b16 %v927
    %v1337 = vunpack.c.l.b16 %v928
    %v1338 = vunpack.c.h.b16 %v928
    %v1339 = vunpack.c.l.b16 %v929
    %v1340 = vunpack.c.h.b16 %v929
    %v1341 = vunpack.c.l.b16 %v930
    %v1342 = vunpack.c.h.b16 %v930
    %v1343 = vunpack.c.l.b16 %v931
    %v1344 = vunpack.c.h.b16 %v931
    %v1345 = vunpack.c.l.b16 %v932
    %v1346 = vunpack.c.h.b16 %v932
    %v1347 = vunpack.c.l.b16 %v933
    %v1348 = vunpack.c.h.b16 %v933
    %v1349 = vunpack.c.l.b16 %v934
    %v1350 = vunpack.c.h.b16 %v934
    %v1351 = vunpack.c.l.b16 %v935
    %v1352 = vunpack.c.h.b16 %v935
    %v1353 = vunpack.c.l.b16 %v936
    %v1354 = vunpack.c.h.b16 %v936
    %v1355 = vunpack.c.l.b16 %v937
    %v1356 = vunpack.c.h.b16 %v937
    %v1357 = vunpack.c.l.b16 %v938
    %v1358 = vunpack.c.h.b16 %v938
    %v1359 = vunpack.c.l.b16 %v939
    %v1360 = vunpack.c.h.b16 %v939
    %v1361 = vunpack.c.l.b16 %v940
    %v1362 = vunpack.c.h.b16 %v940
    %v1363 = vunpack.c.l.b16 %v941
    %v1364 = vunpack.c.h.b16 %v941
    %v1365 = vunpack.c.l.b16 %v942
    %v1366 = vunpack.c.h.b16 %v942
    %v1367 = vunpack.c.l.b16 %v943
    %v1368 = vunpack.c.h.b16 %v943
    %v1369 = vunpack.c.l.b16 %v944
    %v1370 = vunpack.c.h.b16 %v944
    %v1371 = vunpack.c.l.b16 %v945
    %v1372 = vunpack.c.h.b16 %v945
    %v1373 = vunpack.c.l.b16 %v946
    %v1374 = vunpack.c.h.b16 %v946
    %v1375 = vunpack.c.l.b16 %v947
    %v1376 = vunpack.c.h.b16 %v947
    %v1377 = vunpack.c.l.b16 %v948
    %v1378 = vunpack.c.h.b16 %v948
    %v1379 = vunpack.c.l.b16 %v949
    %v1380 = vunpack.c.h.b16 %v949
    %v1381 = vunpack.c.l.b16 %v950
    %v1382 = vunpack.c.h.b16 %v950
    %v1383 = vunpack.c.l.b16 %v951
    %v1384 = vunpack.c.h.b16 %v951
    %v1385 = vunpack.c.l.b16 %v952
    %v1386 = vunpack.c.h.b16 %v952
    %v1387 = vunpack.c.l.b16 %v953
    %v1388 = vunpack.c.h.b16 %v953
    %v1389 = vunpack.c.l.b16 %v954
    %v1390 = vunpack.c.h.b16 %v954
    %v1391 = vunpack.c.l.b16 %v955
    %v1392 = vunpack.c.h.b16 %v955
    %v1393 = vunpack.c.l.b16 %v956
    %v1394 = vunpack.c.h.b16 %v956
    %v1395 = vunpack.c.l.b16 %v957
    %v1396 = vunpack.c.h.b16 %v957
    %v1397 = vunpack.c.l.b16 %v958
    %v1398 = vunpack.c.h.b16 %v958
    %v1399 = vunpack.c.l.b16 %v959
    %v1400 = vunpack.c.h.b16 %v959
    %v1401 = vunpack.c.l.b16 %v960
    %v1402 = vunpack.c.h.b16 %v960
    %v1403 = vunpack.c.l.b16 %v961
    %v1404 = vunpack.c.h.b16 %v961
    %v1405 = vunpack.c.l.b16 %v962
    %v1406 = vunpack.c.h.b16 %v962
    %v1407 = vunpack.c.l.b16 %v963
    %v1408 = vunpack.c.h.b16 %v963
    %v1409 = vunpack.c.l.b16 %v964
    %v1410 = vunpack.c.h.b16 %v964
    %v1411 = vunpack.c.l.b16 %v965
    %v1412 = vunpack.c.h.b16 %v965
    %v1413 = vunpack.c.l.b16 %v966
    %v1414 = vunpack.c.h.b16 %v966
    %v1415 = vunpack.c.l.b16 %v967
    %v1416 = vunpack.c.h.b16 %v967
    %v1417 = vunpack.c.l.b16 %v968
    %v1418 = vunpack.c.h.b16 %v968
    %v1419 = vunpack.c.l.b16 %v969
    %v1420 = vunpack.c.h.b16 %v969
    %v1421 = vunpack.c.l.b16 %v970
    %v1422 = vunpack.c.h.b16 %v970
    %v1423 = vunpack.c.l.b16 %v971
    %v1424 = vunpack.c.h.b16 %v971
    %v1425 = vunpack.c.l.b16 %v972
    %v1426 = vunpack.c.h.b16 %v972
    %v1427 = vunpack.c.l.b16 %v973
    %v1428 = vunpack.c.h.b16 %v973
    %v1429 = vunpack.c.l.b16 %v974
    %v1430 = vunpack.c.h.b16 %v974
    %v1431 = vunpack.c.l.b16 %v975
    %v1432 = vunpack.c.h.b16 %v975
    %v1433 = vunpack.c.l.b16 %v976
    %v1434 = vunpack.c.h.b16 %v976
    %v1435 = vunpack.c.l.b16 %v977
    %v1436 = vunpack.c.h.b16 %v977
    %v1437 = vunpack.c.l.b16 %v978
    %v1438 = vunpack.c.h.b16 %v978
    %v1439 = vunpack.c.l.b16 %v979
    %v1440 = vunpack.c.h.b16 %v979
    %v1441 = vunpack.c.l.b16 %v980
    %v1442 = vunpack.c.h.b16 %v980
    %v1443 = vunpack.c.l.b16 %v981
    %v1444 = vunpack.c.h.b16 %v981
    %v1445 = vunpack.c.l.b16 %v982
    %v1446 = vunpack.c.h.b16 %v982
    %v1447 = vpack.c.b16 %v1165, %v1159
    %v1448 = vpack.c.b16 %v1166, %v1160
    %v1449 = vpack.c.b16 %v1167, %v1161
    %v1450 = vpack.c.b16 %v1168, %v1162
    %v1451 = vpack.c.b16 %v1169, %v1163
    %v1452 = vpack.c.b16 %v1170, %v1164
    %v1453 = vpack.c.b16 %v1177, %v1171
    %v1454 = vpack.c.b16 %v1178, %v1172
    %v1455 = vpack.c.b16 %v1179, %v1173
    %v1456 = vpack.c.b16 %v1180, %v1174
    %v1457 = vpack.c.b16 %v1181, %v1175
    %v1458 = vpack.c.b16 %v1182, %v1176
    %v1459 = vpack.c.b16 %v1189, %v1183
    %v1460 = vpack.c.b16 %v1190, %v1184
    %v1461 = vpack.c.b16 %v1191, %v1185
    %v1462 = vpack.c.b16 %v1192, %v1186
    %v1463 = vpack.c.b16 %v1193, %v1187
    %v1464 = vpack.c.b16 %v1194, %v1188
    %v1465 = vpack.c.b16 %v1201, %v1195
    %v1466 = vpack.c.b16 %v1202, %v1196
    %v1467 = vpack.c.b16 %v1203, %v1197
    %v1468 = vpack.c.b16 %v1204, %v1198
    %v1469 = vpack.c.b16 %v1205, %v1199
    %v1470 = vpack.c.b16 %v1206, %v1200
    %v1471 = vpack.c.b16 %v1213, %v1207
    %v1472 = vpack.c.b16 %v1214, %v1208
    %v1473 = vpack.c.b16 %v1215, %v1209
    %v1474 = vpack.c.b16 %v1216, %v1210
    %v1475 = vpack.c.b16 %v1217, %v1211
    %v1476 = vpack.c.b16 %v1218, %v1212
    %v1477 = vpack.c.b16 %v1225, %v1219
    %v1478 = vpack.c.b16 %v1226, %v1220
    %v1479 = vpack.c.b16 %v1227, %v1221
    %v1480 = vpack.c.b16 %v1228, %v1222
    %v1481 = vpack.c.b16 %v1229, %v1223
    %v1482 = vpack.c.b16 %v1230, %v1224
    %v1483 = vpack.c.b16 %v1237, %v1231
    %v1484 = vpack.c.b16 %v1238, %v1232
    %v1485 = vpack.c.b16 %v1239, %v1233
    %v1486 = vpack.c.b16 %v1240, %v1234
    %v1487 = vpack.c.b16 %v1241, %v1235
    %v1488 = vpack.c.b16 %v1242, %v1236
    %v1489 = vpack.c.b16 %v1249, %v1243
    %v1490 = vpack.c.b16 %v1250, %v1244
    %v1491 = vpack.c.b16 %v1251, %v1245
    %v1492 = vpack.c.b16 %v1252, %v1246
    %v1493 = vpack.c.b16 %v1253, %v1247
    %v1494 = vpack.c.b16 %v1254, %v1248
    %v1495 = vpack.c.b16 %v1261, %v1255
    %v1496 = vpack.c.b16 %v1262, %v1256
    %v1497 = vpack.c.b16 %v1263, %v1257
    %v1498 = vpack.c.b16 %v1264, %v1258
    %v1499 = vpack.c.b16 %v1265, %v1259
    %v1500 = vpack.c.b16 %v1266, %v1260
    %v1501 = vpack.c.b16 %v1273, %v1267
    %v1502 = vpack.c.b16 %v1274, %v1268
    %v1503 = vpack.c.b16 %v1275, %v1269
    %v1504 = vpack.c.b16 %v1276, %v1270
    %v1505 = vpack.c.b16 %v1277, %v1271
    %v1506 = vpack.c.b16 %v1278, %v1272
    %v1507 = vpack.c.b16 %v1285, %v1279
    %v1508 = vpack.c.b16 %v1286, %v1280
    %v1509 = vpack.c.b16 %v1287, %v1281
    %v1510 = vpack.c.b16 %v1288, %v1282
    %v1511 = vpack.c.b16 %v1289, %v1283
    %v1512 = vpack.c.b16 %v1290, %v1284
    %v1513 = vpack.c.b16 %v1297, %v1291
    %v1514 = vpack.c.b16 %v1298, %v1292
    %v1515 = vpack.c.b16 %v1299, %v1293
    %v1516 = vpack.c.b16 %v1300, %v1294
    %v1517 = vpack.c.b16 %v1301, %v1295
    %v1518 = vpack.c.b16 %v1302, %v1296
    %v1519 = vpack.c.b16 %v1309, %v1303
    %v1520 = vpack.c.b16 %v1310, %v1304
    %v1521 = vpack.c.b16 %v1311, %v1305
    %v1522 = vpack.c.b16 %v1312, %v1306
    %v1523 = vpack.c.b16 %v1313, %v1307
    %v1524 = vpack.c.b16 %v1314, %v1308
    %v1525 = vpack.c.b16 %v1321, %v1315
    %v1526 = vpack.c.b16 %v1322, %v1316
    %v1527 = vpack.c.b16 %v1323, %v1317
    %v1528 = vpack.c.b16 %v1324, %v1318
    %v1529 = vpack.c.b16 %v1325, %v1319
    %v1530 = vpack.c.b16 %v1326, %v1320
    %v1531 = vpack.c.b16 %v1333, %v1327
    %v1532 = vpack.c.b16 %v1334, %v1328
    %v1533 = vpack.c.b16 %v1335, %v1329
    %v1534 = vpack.c.b16 %v1336, %v1330
    %v1535 = vpack.c.b16 %v1337, %v1331
    %v1536 = vpack.c.b16 %v1338, %v1332
    %v1537 = vpack.c.b16 %v1345, %v1339
    %v1538 = vpack.c.b16 %v1346, %v1340
    %v1539 = vpack.c.b16 %v1347, %v1341
    %v1540 = vpack.c.b16 %v1348, %v1342
    %v1541 = vpack.c.b16 %v1349, %v1343
    %v1542 = vpack.c.b16 %v1350, %v1344
    %v1543 = vpack.c.b16 %v1357, %v1351
    %v1544 = vpack.c.b16 %v1358, %v1352
    %v1545 = vpack.c.b16 %v1359, %v1353
    %v1546 = vpack.c.b16 %v1360, %v1354
    %v1547 = vpack.c.b16 %v1361, %v1355
    %v1548 = vpack.c.b16 %v1362, %v1356
    %v1549 = vpack.c.b16 %v1369, %v1363
    %v1550 = vpack.c.b16 %v1370, %v1364
    %v1551 = vpack.c.b16 %v1371, %v1365
    %v1552 = vpack.c.b16 %v1372, %v1366
    %v1553 = vpack.c.b16 %v1373, %v1367
    %v1554 = vpack.c.b16 %v1374, %v1368
    %v1555 = vpack.c.b16 %v1381, %v1375
    %v1556 = vpack.c.b16 %v1382, %v1376
    %v1557 = vpack.c.b16 %v1383, %v1377
    %v1558 = vpack.c.b16 %v1384, %v1378
    %v1559 = vpack.c.b16 %v1385, %v1379
    %v1560 = vpack.c.b16 %v1386, %v1380
    %v1561 = vpack.c.b16 %v1393, %v1387
    %v1562 = vpack.c.b16 %v1394, %v1388
    %v1563 = vpack.c.b16 %v1395, %v1389
    %v1564 = vpack.c.b16 %v1396, %v1390
    %v1565 = vpack.c.b16 %v1397, %v1391
    %v1566 = vpack.c.b16 %v1398, %v1392
    %v1567 = vpack.c.b16 %v1405, %v1399
    %v1568 = vpack.c.b16 %v1406, %v1400
    %v1569 = vpack.c.b16 %v1407, %v1401
    %v1570 = vpack.c.b16 %v1408, %v1402
    %v1571 = vpack.c.b16 %v1409, %v1403
    %v1572 = vpack.c.b16 %v1410, %v1404
    %v1573 = vpack.c.b16 %v1417, %v1411
    %v1574 = vpack.c.b16 %v1418, %v1412
    %v1575 = vpack.c.b16 %v1419, %v1413
    %v1576 = vpack.c.b16 %v1420, %v1414
    %v1577 = vpack.c.b16 %v1421, %v1415
    %v1578 = vpack.c.b16 %v1422, %v1416
    %v1579 = vpack.c.b16 %v1429, %v1423
    %v1580 = vpack.c.b16 %v1430, %v1424
    %v1581 = vpack.c.b16 %v1431, %v1425
    %v1582 = vpack.c.b16 %v1432, %v1426
    %v1583 = vpack.c.b16 %v1433, %v1427
    %v1584 = vpack.c.b16 %v1434, %v1428
    %v1585 = vpack.c.b16 %v1441, %v1435
    %v1586 = vpack.c.b16 %v1442, %v1436
    %v1587 = vpack.c.b16 %v1443, %v1437
    %v1588 = vpack.c.b16 %v1444, %v1438
    %v1589 = vpack.c.b16 %v1445, %v1439
    %v1590 = vpack.c.b16 %v1446, %v1440
    %1735 = vmatprep.subr.bf16.mxu0 %v1448
    %1736 = vmatpush1.bf16.msra.mxu0 %v1447
    %1737 = vmatprep.subr.bf16.mxu0 %v1454
    %1738 = vmatpush1.bf16.msra.mxu0 %v1453
    %1739 = vmatprep.subr.bf16.mxu0 %v1460
    %1740 = vmatpush1.bf16.msra.mxu0 %v1459
    %1741 = vmatprep.subr.bf16.mxu0 %v1466
    %1742 = vmatpush1.bf16.msra.mxu0 %v1465
    %1743 = vmatprep.subr.bf16.mxu0 %v1472
    %1744 = vmatpush1.bf16.msra.mxu0 %v1471
    %1745 = vmatprep.subr.bf16.mxu0 %v1478
    %1746 = vmatpush1.bf16.msra.mxu0 %v1477
    %1747 = vmatprep.subr.bf16.mxu0 %v1484
    %1748 = vmatpush1.bf16.msra.mxu0 %v1483
    %1749 = vmatprep.subr.bf16.mxu0 %v1490
    %1750 = vmatpush1.bf16.msra.mxu0 %v1489
    %1751 = vmatprep.subr.bf16.mxu0 %v1496
    %1752 = vmatpush1.bf16.msra.mxu0 %v1495
    %1753 = vmatprep.subr.bf16.mxu0 %v1502
    %1754 = vmatpush1.bf16.msra.mxu0 %v1501
    %1755 = vmatprep.subr.bf16.mxu0 %v1508
    %1756 = vmatpush1.bf16.msra.mxu0 %v1507
    %1757 = vmatprep.subr.bf16.mxu0 %v1514
    %1758 = vmatpush1.bf16.msra.mxu0 %v1513
    %1759 = vmatprep.subr.bf16.mxu0 %v1520
    %1760 = vmatpush1.bf16.msra.mxu0 %v1519
    %1761 = vmatprep.subr.bf16.mxu0 %v1526
    %1762 = vmatpush1.bf16.msra.mxu0 %v1525
    %1763 = vmatprep.subr.bf16.mxu0 %v1532
    %1764 = vmatpush1.bf16.msra.mxu0 %v1531
    %1765 = vmatprep.subr.bf16.mxu0 %v1538
    %1766 = vmatpush1.bf16.msra.mxu0 %v1537
    %1767 = vmatprep.mubr.bf16.mxu0 %v837
    %1768 = vmatmul.mubr.bf16.gmra.mrb[0].mxu0 %v836
    %v1769 = vpop.f32.mrb[0].mxu0
    %v1770 = vadd.f32 %v988, %v1769
    %v1771 = vpop.f32.mrb[0].mxu0
    %v1772 = vadd.f32 %v992, %v1771
    %v1773 = vpop.f32.mrb[0].mxu0
    %v1774 = vpop.f32.mrb[0].mxu0
    %1775 = vdwg.mxu0
    %1776 = vmatprep.subr.bf16.mxu0 %v1544
    %1777 = vmatpush1.bf16.msra.mxu0 %v1543
    %1778 = vmatprep.subr.bf16.mxu0 %v1550
    %1779 = vmatpush1.bf16.msra.mxu0 %v1549
    %1780 = vmatprep.subr.bf16.mxu0 %v1556
    %1781 = vmatpush1.bf16.msra.mxu0 %v1555
    %1782 = vmatprep.subr.bf16.mxu0 %v1562
    %1783 = vmatpush1.bf16.msra.mxu0 %v1561
    %1784 = vmatprep.subr.bf16.mxu0 %v1568
    %1785 = vmatpush1.bf16.msra.mxu0 %v1567
    %1786 = vmatprep.subr.bf16.mxu0 %v1574
    %1787 = vmatpush1.bf16.msra.mxu0 %v1573
    %1788 = vmatprep.subr.bf16.mxu0 %v1580
    %1789 = vmatpush1.bf16.msra.mxu0 %v1579
    %1790 = vmatprep.subr.bf16.mxu0 %v1586
    %1791 = vmatpush1.bf16.msra.mxu0 %v1585
    %1792 = vmatprep.subr.bf16.mxu0 0
    %1793 = vmatpush1.bf16.msra.mxu0 0
    %1794 = vmatprep.subr.bf16.mxu0 0
    %1795 = vmatpush1.bf16.msra.mxu0 0
    %1796 = vmatprep.subr.bf16.mxu0 0
    %1797 = vmatpush1.bf16.msra.mxu0 0
    %1798 = vmatprep.subr.bf16.mxu0 0
    %1799 = vmatpush1.bf16.msra.mxu0 0
    %1800 = vmatprep.subr.bf16.mxu0 0
    %1801 = vmatpush1.bf16.msra.mxu0 0
    %1802 = vmatprep.subr.bf16.mxu0 0
    %1803 = vmatpush1.bf16.msra.mxu0 0
    %1804 = vmatprep.subr.bf16.mxu0 0
    %1805 = vmatpush1.bf16.msra.mxu0 0
    %1806 = vmatprep.subr.bf16.mxu0 0
    %1807 = vmatpush1.bf16.msra.mxu0 0
    %1808 = vmatprep.mubr.bf16.mxu0 0
    %1809 = vmatmul.mubr.bf16.gmra.mrb[0].mxu0 %v838
    %v1810 = vpop.f32.mrb[0].mxu0
    %v1811 = vadd.f32 %v1770, %v1810
    %v1812 = vpop.f32.mrb[0].mxu0
    %v1813 = vadd.f32 %v1772, %v1812
    %v1814 = vpop.f32.mrb[0].mxu0
    %v1815 = vpop.f32.mrb[0].mxu0
    %1816 = vdwg.mxu0
    %1817 = vmatprep.subr.bf16.mxu0 %v1450
    %1818 = vmatpush1.bf16.msra.mxu0 %v1449
    %1819 = vmatprep.subr.bf16.mxu0 %v1456
    %1820 = vmatpush1.bf16.msra.mxu0 %v1455
    %1821 = vmatprep.subr.bf16.mxu0 %v1462
    %1822 = vmatpush1.bf16.msra.mxu0 %v1461
    %1823 = vmatprep.subr.bf16.mxu0 %v1468
    %1824 = vmatpush1.bf16.msra.mxu0 %v1467
    %1825 = vmatprep.subr.bf16.mxu0 %v1474
    %1826 = vmatpush1.bf16.msra.mxu0 %v1473
    %1827 = vmatprep.subr.bf16.mxu0 %v1480
    %1828 = vmatpush1.bf16.msra.mxu0 %v1479
    %1829 = vmatprep.subr.bf16.mxu0 %v1486
    %1830 = vmatpush1.bf16.msra.mxu0 %v1485
    %1831 = vmatprep.subr.bf16.mxu0 %v1492
    %1832 = vmatpush1.bf16.msra.mxu0 %v1491
    %1833 = vmatprep.subr.bf16.mxu0 %v1498
    %1834 = vmatpush1.bf16.msra.mxu0 %v1497
    %1835 = vmatprep.subr.bf16.mxu0 %v1504
    %1836 = vmatpush1.bf16.msra.mxu0 %v1503
    %1837 = vmatprep.subr.bf16.mxu0 %v1510
    %1838 = vmatpush1.bf16.msra.mxu0 %v1509
    %1839 = vmatprep.subr.bf16.mxu0 %v1516
    %1840 = vmatpush1.bf16.msra.mxu0 %v1515
    %1841 = vmatprep.subr.bf16.mxu0 %v1522
    %1842 = vmatpush1.bf16.msra.mxu0 %v1521
    %1843 = vmatprep.subr.bf16.mxu0 %v1528
    %1844 = vmatpush1.bf16.msra.mxu0 %v1527
    %1845 = vmatprep.subr.bf16.mxu0 %v1534
    %1846 = vmatpush1.bf16.msra.mxu0 %v1533
    %1847 = vmatprep.subr.bf16.mxu0 %v1540
    %1848 = vmatpush1.bf16.msra.mxu0 %v1539
    %1849 = vmatprep.mubr.bf16.mxu0 %v837
    %1850 = vmatmul.mubr.bf16.gmra.mrb[0].mxu0 %v836
    %v1851 = vpop.f32.mrb[0].mxu0
    %v1852 = vadd.f32 %v996, %v1851
    %v1853 = vpop.f32.mrb[0].mxu0
    %v1854 = vadd.f32 %v1000, %v1853
    %v1855 = vpop.f32.mrb[0].mxu0
    %v1856 = vpop.f32.mrb[0].mxu0
    %1857 = vdwg.mxu0
    %1858 = vmatprep.subr.bf16.mxu0 %v1546
    %1859 = vmatpush1.bf16.msra.mxu0 %v1545
    %1860 = vmatprep.subr.bf16.mxu0 %v1552
    %1861 = vmatpush1.bf16.msra.mxu0 %v1551
    %1862 = vmatprep.subr.bf16.mxu0 %v1558
    %1863 = vmatpush1.bf16.msra.mxu0 %v1557
    %1864 = vmatprep.subr.bf16.mxu0 %v1564
    %1865 = vmatpush1.bf16.msra.mxu0 %v1563
    %1866 = vmatprep.subr.bf16.mxu0 %v1570
    %1867 = vmatpush1.bf16.msra.mxu0 %v1569
    %1868 = vmatprep.subr.bf16.mxu0 %v1576
    %1869 = vmatpush1.bf16.msra.mxu0 %v1575
    %1870 = vmatprep.subr.bf16.mxu0 %v1582
    %1871 = vmatpush1.bf16.msra.mxu0 %v1581
    %1872 = vmatprep.subr.bf16.mxu0 %v1588
    %1873 = vmatpush1.bf16.msra.mxu0 %v1587
    %1874 = vmatprep.subr.bf16.mxu0 0
    %1875 = vmatpush1.bf16.msra.mxu0 0
    %1876 = vmatprep.subr.bf16.mxu0 0
    %1877 = vmatpush1.bf16.msra.mxu0 0
    %1878 = vmatprep.subr.bf16.mxu0 0
    %1879 = vmatpush1.bf16.msra.mxu0 0
    %1880 = vmatprep.subr.bf16.mxu0 0
    %1881 = vmatpush1.bf16.msra.mxu0 0
    %1882 = vmatprep.subr.bf16.mxu0 0
    %1883 = vmatpush1.bf16.msra.mxu0 0
    %1884 = vmatprep.subr.bf16.mxu0 0
    %1885 = vmatpush1.bf16.msra.mxu0 0
    %1886 = vmatprep.subr.bf16.mxu0 0
    %1887 = vmatpush1.bf16.msra.mxu0 0
    %1888 = vmatprep.subr.bf16.mxu0 0
    %1889 = vmatpush1.bf16.msra.mxu0 0
    %1890 = vmatprep.mubr.bf16.mxu0 0
    %1891 = vmatmul.mubr.bf16.gmra.mrb[0].mxu0 %v838
    %v1892 = vpop.f32.mrb[0].mxu0
    %v1893 = vadd.f32 %v1852, %v1892
    %v1894 = vpop.f32.mrb[0].mxu0
    %v1895 = vadd.f32 %v1854, %v1894
    %v1896 = vpop.f32.mrb[0].mxu0
    %v1897 = vpop.f32.mrb[0].mxu0
    %1898 = vdwg.mxu0
    %1899 = vmatprep.subr.bf16.mxu0 %v1452
    %1900 = vmatpush1.bf16.msra.mxu0 %v1451
    %1901 = vmatprep.subr.bf16.mxu0 %v1458
    %1902 = vmatpush1.bf16.msra.mxu0 %v1457
    %1903 = vmatprep.subr.bf16.mxu0 %v1464
    %1904 = vmatpush1.bf16.msra.mxu0 %v1463
    %1905 = vmatprep.subr.bf16.mxu0 %v1470
    %1906 = vmatpush1.bf16.msra.mxu0 %v1469
    %1907 = vmatprep.subr.bf16.mxu0 %v1476
    %1908 = vmatpush1.bf16.msra.mxu0 %v1475
    %1909 = vmatprep.subr.bf16.mxu0 %v1482
    %1910 = vmatpush1.bf16.msra.mxu0 %v1481
    %1911 = vmatprep.subr.bf16.mxu0 %v1488
    %1912 = vmatpush1.bf16.msra.mxu0 %v1487
    %1913 = vmatprep.subr.bf16.mxu0 %v1494
    %1914 = vmatpush1.bf16.msra.mxu0 %v1493
    %1915 = vmatprep.subr.bf16.mxu0 %v1500
    %1916 = vmatpush1.bf16.msra.mxu0 %v1499
    %1917 = vmatprep.subr.bf16.mxu0 %v1506
    %1918 = vmatpush1.bf16.msra.mxu0 %v1505
    %1919 = vmatprep.subr.bf16.mxu0 %v1512
    %1920 = vmatpush1.bf16.msra.mxu0 %v1511
    %1921 = vmatprep.subr.bf16.mxu0 %v1518
    %1922 = vmatpush1.bf16.msra.mxu0 %v1517
    %1923 = vmatprep.subr.bf16.mxu0 %v1524
    %1924 = vmatpush1.bf16.msra.mxu0 %v1523
    %1925 = vmatprep.subr.bf16.mxu0 %v1530
    %1926 = vmatpush1.bf16.msra.mxu0 %v1529
    %1927 = vmatprep.subr.bf16.mxu0 %v1536
    %1928 = vmatpush1.bf16.msra.mxu0 %v1535
    %1929 = vmatprep.subr.bf16.mxu0 %v1542
    %1930 = vmatpush1.bf16.msra.mxu0 %v1541
    %1931 = vmatprep.mubr.bf16.mxu0 %v837
    %1932 = vmatmul.mubr.bf16.gmra.mrb[0].mxu0 %v836
    %v1933 = vpop.f32.mrb[0].mxu0
    %v1934 = vadd.f32 %v1004, %v1933
    %v1935 = vpop.f32.mrb[0].mxu0
    %v1936 = vadd.f32 %v1008, %v1935
    %v1937 = vpop.f32.mrb[0].mxu0
    %v1938 = vpop.f32.mrb[0].mxu0
    %1939 = vdwg.mxu0
    %1940 = vmatprep.subr.bf16.mxu0 %v1548
    %1941 = vmatpush1.bf16.msra.mxu0 %v1547
    %1942 = vmatprep.subr.bf16.mxu0 %v1554
    %1943 = vmatpush1.bf16.msra.mxu0 %v1553
    %1944 = vmatprep.subr.bf16.mxu0 %v1560
    %1945 = vmatpush1.bf16.msra.mxu0 %v1559
    %1946 = vmatprep.subr.bf16.mxu0 %v1566
    %1947 = vmatpush1.bf16.msra.mxu0 %v1565
    %1948 = vmatprep.subr.bf16.mxu0 %v1572
    %1949 = vmatpush1.bf16.msra.mxu0 %v1571
    %1950 = vmatprep.subr.bf16.mxu0 %v1578
    %1951 = vmatpush1.bf16.msra.mxu0 %v1577
    %1952 = vmatprep.subr.bf16.mxu0 %v1584
    %1953 = vmatpush1.bf16.msra.mxu0 %v1583
    %1954 = vmatprep.subr.bf16.mxu0 %v1590
    %1955 = vmatpush1.bf16.msra.mxu0 %v1589
    %1956 = vmatprep.subr.bf16.mxu0 0
    %1957 = vmatpush1.bf16.msra.mxu0 0
    %1958 = vmatprep.subr.bf16.mxu0 0
    %1959 = vmatpush1.bf16.msra.mxu0 0
    %1960 = vmatprep.subr.bf16.mxu0 0
    %1961 = vmatpush1.bf16.msra.mxu0 0
    %1962 = vmatprep.subr.bf16.mxu0 0
    %1963 = vmatpush1.bf16.msra.mxu0 0
    %1964 = vmatprep.subr.bf16.mxu0 0
    %1965 = vmatpush1.bf16.msra.mxu0 0
    %1966 = vmatprep.subr.bf16.mxu0 0
    %1967 = vmatpush1.bf16.msra.mxu0 0
    %1968 = vmatprep.subr.bf16.mxu0 0
    %1969 = vmatpush1.bf16.msra.mxu0 0
    %1970 = vmatprep.subr.bf16.mxu0 0
    %1971 = vmatpush1.bf16.msra.mxu0 0
    %1972 = vmatprep.mubr.bf16.mxu0 0
    %1973 = vmatmul.mubr.bf16.gmra.mrb[0].mxu0 %v838
    %v1974 = vpop.f32.mrb[0].mxu0
    %v1975 = vadd.f32 %v1934, %v1974
    %v1976 = vpop.f32.mrb[0].mxu0
    %v1977 = vadd.f32 %v1936, %v1976
    %v1978 = vpop.f32.mrb[0].mxu0
    %v1979 = vpop.f32.mrb[0].mxu0
    %1980 = vdwg.mxu0
    %v1981 = vtanh.pop %v1811
    %v1982 = vtanh.pop %v1813
    %v1983 = vtanh.pop %v1893
    %v1984 = vtanh.pop %v1895
    %v1985 = vtanh.pop %v1975
    %v1986 = vtanh.pop %v1977
    %1987 = vst [vmem:[%s11] sm:$0xff] %v1981
    %1988 = vst [vmem:[%s11 + $0x8] sm:$0xff] %v1982
    %1989 = vst [vmem:[%s11 + $0x10] sm:$0xff] %v1983
    %1990 = vst [vmem:[%s11 + $0x18] sm:$0xff] %v1984
    %1991 = vst [vmem:[%s11 + $0x20] sm:$0xff] %v1985
    %1992 = vst [vmem:[%s11 + $0x28] sm:$0xff] %v1986
    // Predicated region
    $region66: #{generator_mlp_forward.1} parent=1 // pred_check
      _
    $region67: #{generator_mlp_forward.1} parent=1 // pred_check_branch
      %1994 = sbr.rel (0) target = $region69
    $region68: #{generator_mlp_forward.1} parent=1 // pred_region
      _
    $region69: #{generator_mlp_forward.1} parent=1 // pred_fallthru
      _
    // Predicated region
    $region70: #{generator_mlp_forward.1} parent=1 // pred_check
      _
    $region71: #{generator_mlp_forward.1} parent=1 // pred_check_branch
      %1996 = sbr.rel (0) target = $region73
    $region72: #{generator_mlp_forward.1} parent=1 // pred_region
      _
    $region73: #{generator_mlp_forward.1} parent=1 // pred_fallthru
      _
    %1997 = vsyncpa [#allocation3], 1
    %1998 = vsyncpa [#allocation5], 1
    %1999 = vsyncpa [#allocation8], 1

</llo_original>
